<compile_context>
chip_gen: v7x
topology: tpu7x:2x2x1
jax: 0.10.0
libtpu: 0.0.40
codegen_flags: <defaults>
</compile_context>

<pallas_src>
import math
import functools

import jax
import jax.numpy as jnp
from jax.experimental import pallas as pl
from jax.experimental.pallas import tpu as pltpu

# ----- small model config (ModelArgs scaled down) -----
DIM = 32
N_HEADS = 4
N_KV_HEADS = 2
HEAD_DIM = DIM // N_HEADS          # 8
N_REP = N_HEADS // N_KV_HEADS      # 2
DQ = N_HEADS * HEAD_DIM            # 32
DKV = N_KV_HEADS * HEAD_DIM        # 16
MAX_BATCH = 2
MAX_SEQ_LEN = 16
ROPE_THETA = 1000000.0

F32 = jnp.float32


# ---------------------------------------------------------------------------
# Single fused kernel: one grid step per batch element.
#   x_ref       (1, S, DIM)
#   wqkv_ref    (DIM, DQ + 2*DKV)   -- [Wq | Wk | Wv]^T, pre-concatenated
#   wot_ref     (DQ, DIM)           -- Wo^T
#   cos/sin_ref (S, HEAD_DIM)
#   mask_ref    (S, SKV)
#   ck/cv in    (1, MAX_SEQ_LEN, DKV)   (cache, flattened kv-head*head_dim)
#   y_ref       (1, S, DIM)
#   ck/cv out   (1, MAX_SEQ_LEN, DKV)   (aliased with the inputs -> in place)
# ---------------------------------------------------------------------------
def _fused_attention_kernel(x_ref, wqkv_ref, wot_ref, cos_ref, sin_ref, mask_ref,
                            ck_in_ref, cv_in_ref,
                            y_ref, ck_out_ref, cv_out_ref,
                            *, start_pos, skv):
    S = x_ref.shape[1]
    half = HEAD_DIM // 2
    inv_scale = 1.0 / math.sqrt(HEAD_DIM)

    # ---- fused Q/K/V projection: one MXU matmul for all three ----
    x = x_ref[0]                                                     # (S, DIM)
    qkv = jnp.dot(x, wqkv_ref[...], preferred_element_type=F32)      # (S, DQ+2*DKV)
    q_all = qkv[:, :DQ]                                              # (S, DQ)
    k_all = qkv[:, DQ:DQ + DKV]                                      # (S, DKV)
    v_all = qkv[:, DQ + DKV:]                                        # (S, DKV)

    cos = cos_ref[...]
    sin = sin_ref[...]

    def rope(t):  # t: (S, HEAD_DIM)
        t1 = t[:, :half]
        t2 = t[:, half:]
        rot = jnp.concatenate([-t2, t1], axis=-1)
        # TODO(synk): switch to pltpu.roll(t, half, axis=-1) * sign once
        #             sub-128-lane roll lowering is verified on all targets.
        return t * cos + rot * sin

    # ---- RoPE on K (both kv heads), kept lane-dense (S, DKV) ----
    k_rope = jnp.concatenate(
        [rope(k_all[:, h * HEAD_DIM:(h + 1) * HEAD_DIM]) for h in range(N_KV_HEADS)],
        axis=-1)                                                     # (S, DKV)

    # ---- KV-cache update (in-place via aliasing): copy old rows, write new ----
    ck_out_ref[...] = ck_in_ref[...]
    cv_out_ref[...] = cv_in_ref[...]
    ck_out_ref[0, start_pos:start_pos + S, :] = k_rope
    cv_out_ref[0, start_pos:start_pos + S, :] = v_all

    keys_all = ck_out_ref[0, :skv, :]                                # (skv, DKV)
    vals_all = cv_out_ref[0, :skv, :]                                # (skv, DKV)

    mask = mask_ref[...]                                             # (S, skv)

    # ---- per-head attention (GQA: query head h uses kv head h // N_REP) ----
    # Static Python loop == fully unrolled; 4 tiny (8x8) matmuls, all in VMEM.
    outs = []
    for h in range(N_HEADS):
        kvh = h // N_REP
        q_h = rope(q_all[:, h * HEAD_DIM:(h + 1) * HEAD_DIM])        # (S, hd)
        k_h = keys_all[:, kvh * HEAD_DIM:(kvh + 1) * HEAD_DIM]       # (skv, hd)
        v_h = vals_all[:, kvh * HEAD_DIM:(kvh + 1) * HEAD_DIM]       # (skv, hd)

        scores = jnp.dot(q_h, k_h.T, preferred_element_type=F32) * inv_scale
        scores = scores + mask
        m = jnp.max(scores, axis=-1, keepdims=True)
        p = jnp.exp(scores - m)
        denom = jnp.sum(p, axis=-1, keepdims=True)
        probs = p * pl.reciprocal(denom, approx=True)
        outs.append(jnp.dot(probs, v_h, preferred_element_type=F32))

    # heads concatenated on the lane axis -> lane-dense (S, DQ) slab
    out_cat = jnp.concatenate(outs, axis=-1)                         # (S, DQ)

    # ---- output projection, single lane-dense HBM store ----
    y_ref[0] = jnp.dot(out_cat, wot_ref[...], preferred_element_type=F32)


# ---------------------------------------------------------------------------
# Wrapper: one pallas_call for the whole Attention.forward
# ---------------------------------------------------------------------------
def attention_forward(x, start_pos, cos, sin, mask, wq, wk, wv, wo,
                      cache_k, cache_v):
    B, S, D = x.shape
    assert D == DIM and B <= MAX_BATCH and start_pos + S <= MAX_SEQ_LEN
    SKV = start_pos + S

    # Fuse QKV weights into one matrix (one MXU push in the kernel).
    wqkv_t = jnp.concatenate([wq, wk, wv], axis=0).T                 # (DIM, DQ+2*DKV)
    wot = wo.T                                                       # (DQ, DIM)

    # Cache handled lane-dense inside the kernel: (B, Smax, Hkv*hd)
    ck2 = cache_k.reshape(MAX_BATCH, MAX_SEQ_LEN, DKV)
    cv2 = cache_v.reshape(MAX_BATCH, MAX_SEQ_LEN, DKV)

    kernel = functools.partial(_fused_attention_kernel,
                               start_pos=start_pos, skv=SKV)

    full = lambda shape: pl.BlockSpec(shape, lambda b: tuple(0 for _ in shape))

    y, ck_new, cv_new = pl.pallas_call(
        kernel,
        grid=(B,),
        in_specs=[
            pl.BlockSpec((1, S, DIM), lambda b: (b, 0, 0)),          # x
            full((DIM, DQ + 2 * DKV)),                               # wqkv^T
            full((DQ, DIM)),                                         # wo^T
            full((S, HEAD_DIM)),                                     # cos
            full((S, HEAD_DIM)),                                     # sin
            full((S, SKV)),                                          # mask
            pl.BlockSpec((1, MAX_SEQ_LEN, DKV), lambda b: (b, 0, 0)),  # cache_k
            pl.BlockSpec((1, MAX_SEQ_LEN, DKV), lambda b: (b, 0, 0)),  # cache_v
        ],
        out_specs=[
            pl.BlockSpec((1, S, DIM), lambda b: (b, 0, 0)),          # y
            pl.BlockSpec((1, MAX_SEQ_LEN, DKV), lambda b: (b, 0, 0)),  # cache_k
            pl.BlockSpec((1, MAX_SEQ_LEN, DKV), lambda b: (b, 0, 0)),  # cache_v
        ],
        out_shape=[
            jax.ShapeDtypeStruct((B, S, DIM), F32),
            jax.ShapeDtypeStruct((MAX_BATCH, MAX_SEQ_LEN, DKV), F32),
            jax.ShapeDtypeStruct((MAX_BATCH, MAX_SEQ_LEN, DKV), F32),
        ],
        # in-place KV cache update (P8): cache_k/cache_v inputs alias outputs 1/2
        input_output_aliases={6: 1, 7: 2},
        compiler_params=pltpu.CompilerParams(
            dimension_semantics=("parallel",)),
    )(x, wqkv_t, wot, cos, sin, mask, ck2, cv2)

    return (y,
            ck_new.reshape(MAX_BATCH, MAX_SEQ_LEN, N_KV_HEADS, HEAD_DIM),
            cv_new.reshape(MAX_BATCH, MAX_SEQ_LEN, N_KV_HEADS, HEAD_DIM))


# ---------------------------------------------------------------------------
# Pure-JAX reference (mirrors the torch forward) for validation
# ---------------------------------------------------------------------------
def reference_forward(x, start_pos, cos, sin, mask, wq, wk, wv, wo,
                      cache_k, cache_v):
    B, S, D = x.shape
    xq = x @ wq.T
    xk = x @ wk.T
    xv = x @ wv.T
    xq = xq.reshape(B, S, N_HEADS, HEAD_DIM)
    xk = xk.reshape(B, S, N_KV_HEADS, HEAD_DIM)
    xv = xv.reshape(B, S, N_KV_HEADS, HEAD_DIM)

    def rope(t):
        t = t.transpose(0, 2, 1, 3)                      # (B, H, S, hd)
        half = HEAD_DIM // 2
        rot = jnp.concatenate([-t[..., half:], t[..., :half]], axis=-1)
        return (t * cos + rot * sin).transpose(0, 2, 1, 3)

    xq, xk = rope(xq), rope(xk)
    cache_k = cache_k.at[:B, start_pos:start_pos + S].set(xk)
    cache_v = cache_v.at[:B, start_pos:start_pos + S].set(xv)
    keys = cache_k[:B, :start_pos + S]
    values = cache_v[:B, :start_pos + S]
    keys = jnp.repeat(keys, N_REP, axis=2)
    values = jnp.repeat(values, N_REP, axis=2)
    xq = xq.transpose(0, 2, 1, 3)
    keys = keys.transpose(0, 2, 1, 3)
    values = values.transpose(0, 2, 1, 3)
    scores = jnp.einsum("bhqd,bhkd->bhqk", xq, keys) / math.sqrt(HEAD_DIM)
    scores = scores + mask
    scores = jax.nn.softmax(scores.astype(F32), axis=-1)
    out = jnp.einsum("bhqk,bhkd->bhqd", scores, values)
    out = out.transpose(0, 2, 1, 3).reshape(B, S, -1)
    return out @ wo.T, cache_k, cache_v


if __name__ == "__main__":
    key = jax.random.PRNGKey(0)
    kx, kq, kk, kv, ko = jax.random.split(key, 5)

    B, S = 2, 8
    start_pos = 0

    x = jax.random.normal(kx, (B, S, DIM), dtype=F32)
    wq = 0.05 * jax.random.normal(kq, (N_HEADS * HEAD_DIM, DIM), dtype=F32)
    wk = 0.05 * jax.random.normal(kk, (N_KV_HEADS * HEAD_DIM, DIM), dtype=F32)
    wv = 0.05 * jax.random.normal(kv, (N_KV_HEADS * HEAD_DIM, DIM), dtype=F32)
    wo = 0.05 * jax.random.normal(ko, (DIM, N_HEADS * HEAD_DIM), dtype=F32)

    cache_k = jnp.zeros((MAX_BATCH, MAX_SEQ_LEN, N_KV_HEADS, HEAD_DIM), dtype=F32)
    cache_v = jnp.zeros((MAX_BATCH, MAX_SEQ_LEN, N_KV_HEADS, HEAD_DIM), dtype=F32)

    # rotary cos/sin, equivalent to cat((cos, cos), 1) of freqs_cis.real/imag
    inv_freq = 1.0 / (ROPE_THETA ** (jnp.arange(0, HEAD_DIM, 2, dtype=F32) / HEAD_DIM))
    t = jnp.arange(start_pos, start_pos + S, dtype=F32)
    freqs = jnp.outer(t, inv_freq)                                    # (S, hd/2)
    cos = jnp.concatenate([jnp.cos(freqs), jnp.cos(freqs)], axis=1)   # (S, hd)
    sin = jnp.concatenate([jnp.sin(freqs), jnp.sin(freqs)], axis=1)

    # causal additive mask (Sq, Skv)
    mask = jnp.where(
        jnp.triu(jnp.ones((S, start_pos + S), dtype=bool), k=1 + start_pos),
        -jnp.inf, 0.0).astype(F32)

    y, new_ck, new_cv = attention_forward(
        x, start_pos, cos, sin, mask, wq, wk, wv, wo, cache_k, cache_v)
    jax.block_until_ready(y)

    y_ref, ck_ref, cv_ref = reference_forward(
        x, start_pos, cos, sin, mask, wq, wk, wv, wo, cache_k, cache_v)

    # tolerance covers the EUP approximate-reciprocal softmax (and is far
    # tighter than the float16 precision of the torch reference).
    assert jnp.allclose(y, y_ref, atol=2e-3, rtol=2e-3), (
        float(jnp.max(jnp.abs(y - y_ref))))
    assert jnp.allclose(new_ck, ck_ref, atol=2e-3, rtol=2e-3), (
        float(jnp.max(jnp.abs(new_ck - ck_ref))))
    assert jnp.allclose(new_cv, cv_ref, atol=2e-3, rtol=2e-3), (
        float(jnp.max(jnp.abs(new_cv - cv_ref))))

    print("KERNEL_OK")
</pallas_src>

<mosaic_0001>
module attributes {stable_mosaic.version = 11 : i64} {
  func.func @_fused_attention_kernel(%arg0: i32, %arg1: memref<1x8x32xf32, #tpu.memory_space<vmem>>, %arg2: memref<32x64xf32, #tpu.memory_space<vmem>>, %arg3: memref<32x32xf32, #tpu.memory_space<vmem>>, %arg4: memref<8x8xf32, #tpu.memory_space<vmem>>, %arg5: memref<8x8xf32, #tpu.memory_space<vmem>>, %arg6: memref<8x8xf32, #tpu.memory_space<vmem>>, %arg7: memref<1x16x16xf32, #tpu.memory_space<vmem>>, %arg8: memref<1x16x16xf32, #tpu.memory_space<vmem>>, %arg9: memref<1x8x32xf32, #tpu.memory_space<vmem>>, %arg10: memref<1x16x16xf32, #tpu.memory_space<vmem>>, %arg11: memref<1x16x16xf32, #tpu.memory_space<vmem>>) attributes {dimension_semantics = [#tpu.dimension_semantics<parallel>], iteration_bounds = array<i64: 2>, scalar_prefetch = 0 : i64, scratch_operands = 0 : i64, tpu.core_type = #tpu.core_type<tc>, window_params = [{transform_indices = @transform_0, window_bounds = array<i64: 1, 8, 32>}, {pipeline_mode = #tpu.pipeline_mode<synchronous>, transform_indices = @transform_1, window_bounds = array<i64: 32, 64>}, {pipeline_mode = #tpu.pipeline_mode<synchronous>, transform_indices = @transform_2, window_bounds = array<i64: 32, 32>}, {pipeline_mode = #tpu.pipeline_mode<synchronous>, transform_indices = @transform_3, window_bounds = array<i64: 8, 8>}, {pipeline_mode = #tpu.pipeline_mode<synchronous>, transform_indices = @transform_4, window_bounds = array<i64: 8, 8>}, {pipeline_mode = #tpu.pipeline_mode<synchronous>, transform_indices = @transform_5, window_bounds = array<i64: 8, 8>}, {transform_indices = @transform_6, window_bounds = array<i64: 1, 16, 16>}, {transform_indices = @transform_7, window_bounds = array<i64: 1, 16, 16>}, {transform_indices = @transform_8, window_bounds = array<i64: 1, 8, 32>}, {transform_indices = @transform_9, window_bounds = array<i64: 1, 16, 16>}, {transform_indices = @transform_10, window_bounds = array<i64: 1, 16, 16>}]} {
    %c0 = arith.constant 0 : index
    %c0_0 = arith.constant 0 : index
    %c0_1 = arith.constant 0 : index
    %0 = vector.load %arg1[%c0, %c0_0, %c0_1] : memref<1x8x32xf32, #tpu.memory_space<vmem>>, vector<1x8x32xf32>
    %1 = vector.shape_cast %0 : vector<1x8x32xf32> to vector<8x32xf32>
    %c0_2 = arith.constant 0 : index
    %c0_3 = arith.constant 0 : index
    %2 = vector.load %arg2[%c0_2, %c0_3] : memref<32x64xf32, #tpu.memory_space<vmem>>, vector<32x64xf32>
    %cst = arith.constant dense<0.000000e+00> : vector<8x64xf32>
    %3 = tpu.matmul %1, %2, %cst {dimension_numbers = #tpu.dot_dimension_numbers<[1], [0], [0], [1], [0, 0, 1, 1], [], []>} : vector<8x32xf32>, vector<32x64xf32>, vector<8x64xf32> -> vector<8x64xf32>
    %4 = vector.extract_strided_slice %3 {offsets = [0, 0], sizes = [8, 32], strides = [1, 1]} : vector<8x64xf32> to vector<8x32xf32>
    %5 = vector.extract_strided_slice %3 {offsets = [0, 32], sizes = [8, 16], strides = [1, 1]} : vector<8x64xf32> to vector<8x16xf32>
    %6 = vector.extract_strided_slice %3 {offsets = [0, 48], sizes = [8, 16], strides = [1, 1]} : vector<8x64xf32> to vector<8x16xf32>
    %c0_4 = arith.constant 0 : index
    %c0_5 = arith.constant 0 : index
    %7 = vector.load %arg4[%c0_4, %c0_5] : memref<8x8xf32, #tpu.memory_space<vmem>>, vector<8x8xf32>
    %c0_6 = arith.constant 0 : index
    %c0_7 = arith.constant 0 : index
    %8 = vector.load %arg5[%c0_6, %c0_7] : memref<8x8xf32, #tpu.memory_space<vmem>>, vector<8x8xf32>
    %9 = vector.extract_strided_slice %5 {offsets = [0, 0], sizes = [8, 8], strides = [1, 1]} : vector<8x16xf32> to vector<8x8xf32>
    %10 = vector.extract_strided_slice %9 {offsets = [0, 0], sizes = [8, 4], strides = [1, 1]} : vector<8x8xf32> to vector<8x4xf32>
    %11 = vector.extract_strided_slice %9 {offsets = [0, 4], sizes = [8, 4], strides = [1, 1]} : vector<8x8xf32> to vector<8x4xf32>
    %cst_8 = arith.constant 0.000000e+00 : f32
    %12 = vector.broadcast %cst_8 : f32 to vector<8x4xf32>
    %13 = arith.subf %12, %11 : vector<8x4xf32>
    %14 = tpu.concatenate %13, %10 in 1 : vector<8x4xf32>, vector<8x4xf32> -> vector<8x8xf32>
    %15 = arith.mulf %9, %7 : vector<8x8xf32>
    %16 = arith.mulf %14, %8 : vector<8x8xf32>
    %17 = arith.addf %15, %16 : vector<8x8xf32>
    %18 = vector.extract_strided_slice %5 {offsets = [0, 8], sizes = [8, 8], strides = [1, 1]} : vector<8x16xf32> to vector<8x8xf32>
    %19 = vector.extract_strided_slice %18 {offsets = [0, 0], sizes = [8, 4], strides = [1, 1]} : vector<8x8xf32> to vector<8x4xf32>
    %20 = vector.extract_strided_slice %18 {offsets = [0, 4], sizes = [8, 4], strides = [1, 1]} : vector<8x8xf32> to vector<8x4xf32>
    %cst_9 = arith.constant 0.000000e+00 : f32
    %21 = vector.broadcast %cst_9 : f32 to vector<8x4xf32>
    %22 = arith.subf %21, %20 : vector<8x4xf32>
    %23 = tpu.concatenate %22, %19 in 1 : vector<8x4xf32>, vector<8x4xf32> -> vector<8x8xf32>
    %24 = arith.mulf %18, %7 : vector<8x8xf32>
    %25 = arith.mulf %23, %8 : vector<8x8xf32>
    %26 = arith.addf %24, %25 : vector<8x8xf32>
    %27 = tpu.concatenate %17, %26 in 1 : vector<8x8xf32>, vector<8x8xf32> -> vector<8x16xf32>
    %c0_10 = arith.constant 0 : index
    %c0_11 = arith.constant 0 : index
    %c0_12 = arith.constant 0 : index
    %28 = vector.load %arg7[%c0_10, %c0_11, %c0_12] : memref<1x16x16xf32, #tpu.memory_space<vmem>>, vector<1x16x16xf32>
    %c0_13 = arith.constant 0 : index
    %c0_14 = arith.constant 0 : index
    %c0_15 = arith.constant 0 : index
    %29 = vector.load %arg10[%c0_13, %c0_14, %c0_15] : memref<1x16x16xf32, #tpu.memory_space<vmem>>, vector<1x16x16xf32>
    tpu.vector_store %arg10[%c0_13, %c0_14, %c0_15], %28 {strides = array<i32>} : memref<1x16x16xf32, #tpu.memory_space<vmem>>, vector<1x16x16xf32>,
    %c0_16 = arith.constant 0 : index
    %c0_17 = arith.constant 0 : index
    %c0_18 = arith.constant 0 : index
    %30 = vector.load %arg8[%c0_16, %c0_17, %c0_18] : memref<1x16x16xf32, #tpu.memory_space<vmem>>, vector<1x16x16xf32>
    %c0_19 = arith.constant 0 : index
    %c0_20 = arith.constant 0 : index
    %c0_21 = arith.constant 0 : index
    %31 = vector.load %arg11[%c0_19, %c0_20, %c0_21] : memref<1x16x16xf32, #tpu.memory_space<vmem>>, vector<1x16x16xf32>
    tpu.vector_store %arg11[%c0_19, %c0_20, %c0_21], %30 {strides = array<i32>} : memref<1x16x16xf32, #tpu.memory_space<vmem>>, vector<1x16x16xf32>,
    %c0_22 = arith.constant 0 : index
    %c0_23 = arith.constant 0 : index
    %c0_24 = arith.constant 0 : index
    %32 = vector.load %arg10[%c0_22, %c0_23, %c0_24] : memref<1x16x16xf32, #tpu.memory_space<vmem>>, vector<1x8x16xf32>
    %33 = vector.shape_cast %32 : vector<1x8x16xf32> to vector<8x16xf32>
    %34 = vector.shape_cast %27 : vector<8x16xf32> to vector<1x8x16xf32>
    tpu.vector_store %arg10[%c0_22, %c0_23, %c0_24], %34 {strides = array<i32>} : memref<1x16x16xf32, #tpu.memory_space<vmem>>, vector<1x8x16xf32>,
    %c0_25 = arith.constant 0 : index
    %c0_26 = arith.constant 0 : index
    %c0_27 = arith.constant 0 : index
    %35 = vector.load %arg11[%c0_25, %c0_26, %c0_27] : memref<1x16x16xf32, #tpu.memory_space<vmem>>, vector<1x8x16xf32>
    %36 = vector.shape_cast %35 : vector<1x8x16xf32> to vector<8x16xf32>
    %37 = vector.shape_cast %6 : vector<8x16xf32> to vector<1x8x16xf32>
    tpu.vector_store %arg11[%c0_25, %c0_26, %c0_27], %37 {strides = array<i32>} : memref<1x16x16xf32, #tpu.memory_space<vmem>>, vector<1x8x16xf32>,
    %c0_28 = arith.constant 0 : index
    %c0_29 = arith.constant 0 : index
    %c0_30 = arith.constant 0 : index
    %38 = vector.load %arg10[%c0_28, %c0_29, %c0_30] : memref<1x16x16xf32, #tpu.memory_space<vmem>>, vector<1x8x16xf32>
    %39 = vector.shape_cast %38 : vector<1x8x16xf32> to vector<8x16xf32>
    %c0_31 = arith.constant 0 : index
    %c0_32 = arith.constant 0 : index
    %c0_33 = arith.constant 0 : index
    %40 = vector.load %arg11[%c0_31, %c0_32, %c0_33] : memref<1x16x16xf32, #tpu.memory_space<vmem>>, vector<1x8x16xf32>
    %41 = vector.shape_cast %40 : vector<1x8x16xf32> to vector<8x16xf32>
    %c0_34 = arith.constant 0 : index
    %c0_35 = arith.constant 0 : index
    %42 = vector.load %arg6[%c0_34, %c0_35] : memref<8x8xf32, #tpu.memory_space<vmem>>, vector<8x8xf32>
    %43 = vector.extract_strided_slice %4 {offsets = [0, 0], sizes = [8, 8], strides = [1, 1]} : vector<8x32xf32> to vector<8x8xf32>
    %44 = vector.extract_strided_slice %43 {offsets = [0, 0], sizes = [8, 4], strides = [1, 1]} : vector<8x8xf32> to vector<8x4xf32>
    %45 = vector.extract_strided_slice %43 {offsets = [0, 4], sizes = [8, 4], strides = [1, 1]} : vector<8x8xf32> to vector<8x4xf32>
    %cst_36 = arith.constant 0.000000e+00 : f32
    %46 = vector.broadcast %cst_36 : f32 to vector<8x4xf32>
    %47 = arith.subf %46, %45 : vector<8x4xf32>
    %48 = tpu.concatenate %47, %44 in 1 : vector<8x4xf32>, vector<8x4xf32> -> vector<8x8xf32>
    %49 = arith.mulf %43, %7 : vector<8x8xf32>
    %50 = arith.mulf %48, %8 : vector<8x8xf32>
    %51 = arith.addf %49, %50 : vector<8x8xf32>
    %52 = vector.extract_strided_slice %39 {offsets = [0, 0], sizes = [8, 8], strides = [1, 1]} : vector<8x16xf32> to vector<8x8xf32>
    %53 = vector.extract_strided_slice %41 {offsets = [0, 0], sizes = [8, 8], strides = [1, 1]} : vector<8x16xf32> to vector<8x8xf32>
    %54 = tpu.transpose %52, [1, 0] : vector<8x8xf32> -> vector<8x8xf32>
    %cst_37 = arith.constant dense<0.000000e+00> : vector<8x8xf32>
    %55 = tpu.matmul %51, %54, %cst_37 {dimension_numbers = #tpu.dot_dimension_numbers<[1], [0], [0], [1], [0, 0, 1, 1], [], []>} : vector<8x8xf32>, vector<8x8xf32>, vector<8x8xf32> -> vector<8x8xf32>
    %cst_38 = arith.constant 0.353553385 : f32
    %56 = vector.broadcast %cst_38 : f32 to vector<8x8xf32>
    %57 = arith.mulf %55, %56 : vector<8x8xf32>
    %58 = arith.addf %57, %42 : vector<8x8xf32>
    %cst_39 = arith.constant dense<0xFF800000> : vector<8xf32>
    %59 = vector.multi_reduction <maximumf>, %58, %cst_39 [1] : vector<8x8xf32> to vector<8xf32>
    %60 = vector.shape_cast %59 : vector<8xf32> to vector<8x1xf32>
    %61 = vector.broadcast %60 : vector<8x1xf32> to vector<8x8xf32>
    %62 = arith.subf %58, %61 : vector<8x8xf32>
    %63 = math.exp %62 : vector<8x8xf32>
    %cst_40 = arith.constant dense<0.000000e+00> : vector<8xf32>
    %64 = vector.multi_reduction <add>, %63, %cst_40 [1] : vector<8x8xf32> to vector<8xf32>
    %65 = vector.shape_cast %64 : vector<8xf32> to vector<8x1xf32>
    %66 = tpu.reciprocal %65 {approx = true} : vector<8x1xf32> -> vector<8x1xf32>
    %67 = vector.broadcast %66 : vector<8x1xf32> to vector<8x8xf32>
    %68 = arith.mulf %63, %67 : vector<8x8xf32>
    %cst_41 = arith.constant dense<0.000000e+00> : vector<8x8xf32>
    %69 = tpu.matmul %68, %53, %cst_41 {dimension_numbers = #tpu.dot_dimension_numbers<[1], [0], [0], [1], [0, 0, 1, 1], [], []>} : vector<8x8xf32>, vector<8x8xf32>, vector<8x8xf32> -> vector<8x8xf32>
    %70 = vector.extract_strided_slice %4 {offsets = [0, 8], sizes = [8, 8], strides = [1, 1]} : vector<8x32xf32> to vector<8x8xf32>
    %71 = vector.extract_strided_slice %70 {offsets = [0, 0], sizes = [8, 4], strides = [1, 1]} : vector<8x8xf32> to vector<8x4xf32>
    %72 = vector.extract_strided_slice %70 {offsets = [0, 4], sizes = [8, 4], strides = [1, 1]} : vector<8x8xf32> to vector<8x4xf32>
    %cst_42 = arith.constant 0.000000e+00 : f32
    %73 = vector.broadcast %cst_42 : f32 to vector<8x4xf32>
    %74 = arith.subf %73, %72 : vector<8x4xf32>
    %75 = tpu.concatenate %74, %71 in 1 : vector<8x4xf32>, vector<8x4xf32> -> vector<8x8xf32>
    %76 = arith.mulf %70, %7 : vector<8x8xf32>
    %77 = arith.mulf %75, %8 : vector<8x8xf32>
    %78 = arith.addf %76, %77 : vector<8x8xf32>
    %79 = vector.extract_strided_slice %39 {offsets = [0, 0], sizes = [8, 8], strides = [1, 1]} : vector<8x16xf32> to vector<8x8xf32>
    %80 = vector.extract_strided_slice %41 {offsets = [0, 0], sizes = [8, 8], strides = [1, 1]} : vector<8x16xf32> to vector<8x8xf32>
    %81 = tpu.transpose %79, [1, 0] : vector<8x8xf32> -> vector<8x8xf32>
    %cst_43 = arith.constant dense<0.000000e+00> : vector<8x8xf32>
    %82 = tpu.matmul %78, %81, %cst_43 {dimension_numbers = #tpu.dot_dimension_numbers<[1], [0], [0], [1], [0, 0, 1, 1], [], []>} : vector<8x8xf32>, vector<8x8xf32>, vector<8x8xf32> -> vector<8x8xf32>
    %cst_44 = arith.constant 0.353553385 : f32
    %83 = vector.broadcast %cst_44 : f32 to vector<8x8xf32>
    %84 = arith.mulf %82, %83 : vector<8x8xf32>
    %85 = arith.addf %84, %42 : vector<8x8xf32>
    %cst_45 = arith.constant dense<0xFF800000> : vector<8xf32>
    %86 = vector.multi_reduction <maximumf>, %85, %cst_45 [1] : vector<8x8xf32> to vector<8xf32>
    %87 = vector.shape_cast %86 : vector<8xf32> to vector<8x1xf32>
    %88 = vector.broadcast %87 : vector<8x1xf32> to vector<8x8xf32>
    %89 = arith.subf %85, %88 : vector<8x8xf32>
    %90 = math.exp %89 : vector<8x8xf32>
    %cst_46 = arith.constant dense<0.000000e+00> : vector<8xf32>
    %91 = vector.multi_reduction <add>, %90, %cst_46 [1] : vector<8x8xf32> to vector<8xf32>
    %92 = vector.shape_cast %91 : vector<8xf32> to vector<8x1xf32>
    %93 = tpu.reciprocal %92 {approx = true} : vector<8x1xf32> -> vector<8x1xf32>
    %94 = vector.broadcast %93 : vector<8x1xf32> to vector<8x8xf32>
    %95 = arith.mulf %90, %94 : vector<8x8xf32>
    %cst_47 = arith.constant dense<0.000000e+00> : vector<8x8xf32>
    %96 = tpu.matmul %95, %80, %cst_47 {dimension_numbers = #tpu.dot_dimension_numbers<[1], [0], [0], [1], [0, 0, 1, 1], [], []>} : vector<8x8xf32>, vector<8x8xf32>, vector<8x8xf32> -> vector<8x8xf32>
    %97 = vector.extract_strided_slice %4 {offsets = [0, 16], sizes = [8, 8], strides = [1, 1]} : vector<8x32xf32> to vector<8x8xf32>
    %98 = vector.extract_strided_slice %97 {offsets = [0, 0], sizes = [8, 4], strides = [1, 1]} : vector<8x8xf32> to vector<8x4xf32>
    %99 = vector.extract_strided_slice %97 {offsets = [0, 4], sizes = [8, 4], strides = [1, 1]} : vector<8x8xf32> to vector<8x4xf32>
    %cst_48 = arith.constant 0.000000e+00 : f32
    %100 = vector.broadcast %cst_48 : f32 to vector<8x4xf32>
    %101 = arith.subf %100, %99 : vector<8x4xf32>
    %102 = tpu.concatenate %101, %98 in 1 : vector<8x4xf32>, vector<8x4xf32> -> vector<8x8xf32>
    %103 = arith.mulf %97, %7 : vector<8x8xf32>
    %104 = arith.mulf %102, %8 : vector<8x8xf32>
    %105 = arith.addf %103, %104 : vector<8x8xf32>
    %106 = vector.extract_strided_slice %39 {offsets = [0, 8], sizes = [8, 8], strides = [1, 1]} : vector<8x16xf32> to vector<8x8xf32>
    %107 = vector.extract_strided_slice %41 {offsets = [0, 8], sizes = [8, 8], strides = [1, 1]} : vector<8x16xf32> to vector<8x8xf32>
    %108 = tpu.transpose %106, [1, 0] : vector<8x8xf32> -> vector<8x8xf32>
    %cst_49 = arith.constant dense<0.000000e+00> : vector<8x8xf32>
    %109 = tpu.matmul %105, %108, %cst_49 {dimension_numbers = #tpu.dot_dimension_numbers<[1], [0], [0], [1], [0, 0, 1, 1], [], []>} : vector<8x8xf32>, vector<8x8xf32>, vector<8x8xf32> -> vector<8x8xf32>
    %cst_50 = arith.constant 0.353553385 : f32
    %110 = vector.broadcast %cst_50 : f32 to vector<8x8xf32>
    %111 = arith.mulf %109, %110 : vector<8x8xf32>
    %112 = arith.addf %111, %42 : vector<8x8xf32>
    %cst_51 = arith.constant dense<0xFF800000> : vector<8xf32>
    %113 = vector.multi_reduction <maximumf>, %112, %cst_51 [1] : vector<8x8xf32> to vector<8xf32>
    %114 = vector.shape_cast %113 : vector<8xf32> to vector<8x1xf32>
    %115 = vector.broadcast %114 : vector<8x1xf32> to vector<8x8xf32>
    %116 = arith.subf %112, %115 : vector<8x8xf32>
    %117 = math.exp %116 : vector<8x8xf32>
    %cst_52 = arith.constant dense<0.000000e+00> : vector<8xf32>
    %118 = vector.multi_reduction <add>, %117, %cst_52 [1] : vector<8x8xf32> to vector<8xf32>
    %119 = vector.shape_cast %118 : vector<8xf32> to vector<8x1xf32>
    %120 = tpu.reciprocal %119 {approx = true} : vector<8x1xf32> -> vector<8x1xf32>
    %121 = vector.broadcast %120 : vector<8x1xf32> to vector<8x8xf32>
    %122 = arith.mulf %117, %121 : vector<8x8xf32>
    %cst_53 = arith.constant dense<0.000000e+00> : vector<8x8xf32>
    %123 = tpu.matmul %122, %107, %cst_53 {dimension_numbers = #tpu.dot_dimension_numbers<[1], [0], [0], [1], [0, 0, 1, 1], [], []>} : vector<8x8xf32>, vector<8x8xf32>, vector<8x8xf32> -> vector<8x8xf32>
    %124 = vector.extract_strided_slice %4 {offsets = [0, 24], sizes = [8, 8], strides = [1, 1]} : vector<8x32xf32> to vector<8x8xf32>
    %125 = vector.extract_strided_slice %124 {offsets = [0, 0], sizes = [8, 4], strides = [1, 1]} : vector<8x8xf32> to vector<8x4xf32>
    %126 = vector.extract_strided_slice %124 {offsets = [0, 4], sizes = [8, 4], strides = [1, 1]} : vector<8x8xf32> to vector<8x4xf32>
    %cst_54 = arith.constant 0.000000e+00 : f32
    %127 = vector.broadcast %cst_54 : f32 to vector<8x4xf32>
    %128 = arith.subf %127, %126 : vector<8x4xf32>
    %129 = tpu.concatenate %128, %125 in 1 : vector<8x4xf32>, vector<8x4xf32> -> vector<8x8xf32>
    %130 = arith.mulf %124, %7 : vector<8x8xf32>
    %131 = arith.mulf %129, %8 : vector<8x8xf32>
    %132 = arith.addf %130, %131 : vector<8x8xf32>
    %133 = vector.extract_strided_slice %39 {offsets = [0, 8], sizes = [8, 8], strides = [1, 1]} : vector<8x16xf32> to vector<8x8xf32>
    %134 = vector.extract_strided_slice %41 {offsets = [0, 8], sizes = [8, 8], strides = [1, 1]} : vector<8x16xf32> to vector<8x8xf32>
    %135 = tpu.transpose %133, [1, 0] : vector<8x8xf32> -> vector<8x8xf32>
    %cst_55 = arith.constant dense<0.000000e+00> : vector<8x8xf32>
    %136 = tpu.matmul %132, %135, %cst_55 {dimension_numbers = #tpu.dot_dimension_numbers<[1], [0], [0], [1], [0, 0, 1, 1], [], []>} : vector<8x8xf32>, vector<8x8xf32>, vector<8x8xf32> -> vector<8x8xf32>
    %cst_56 = arith.constant 0.353553385 : f32
    %137 = vector.broadcast %cst_56 : f32 to vector<8x8xf32>
    %138 = arith.mulf %136, %137 : vector<8x8xf32>
    %139 = arith.addf %138, %42 : vector<8x8xf32>
    %cst_57 = arith.constant dense<0xFF800000> : vector<8xf32>
    %140 = vector.multi_reduction <maximumf>, %139, %cst_57 [1] : vector<8x8xf32> to vector<8xf32>
    %141 = vector.shape_cast %140 : vector<8xf32> to vector<8x1xf32>
    %142 = vector.broadcast %141 : vector<8x1xf32> to vector<8x8xf32>
    %143 = arith.subf %139, %142 : vector<8x8xf32>
    %144 = math.exp %143 : vector<8x8xf32>
    %cst_58 = arith.constant dense<0.000000e+00> : vector<8xf32>
    %145 = vector.multi_reduction <add>, %144, %cst_58 [1] : vector<8x8xf32> to vector<8xf32>
    %146 = vector.shape_cast %145 : vector<8xf32> to vector<8x1xf32>
    %147 = tpu.reciprocal %146 {approx = true} : vector<8x1xf32> -> vector<8x1xf32>
    %148 = vector.broadcast %147 : vector<8x1xf32> to vector<8x8xf32>
    %149 = arith.mulf %144, %148 : vector<8x8xf32>
    %cst_59 = arith.constant dense<0.000000e+00> : vector<8x8xf32>
    %150 = tpu.matmul %149, %134, %cst_59 {dimension_numbers = #tpu.dot_dimension_numbers<[1], [0], [0], [1], [0, 0, 1, 1], [], []>} : vector<8x8xf32>, vector<8x8xf32>, vector<8x8xf32> -> vector<8x8xf32>
    %151 = tpu.concatenate %69, %96, %123, %150 in 1 : vector<8x8xf32>, vector<8x8xf32>, vector<8x8xf32>, vector<8x8xf32> -> vector<8x32xf32>
    %c0_60 = arith.constant 0 : index
    %c0_61 = arith.constant 0 : index
    %152 = vector.load %arg3[%c0_60, %c0_61] : memref<32x32xf32, #tpu.memory_space<vmem>>, vector<32x32xf32>
    %cst_62 = arith.constant dense<0.000000e+00> : vector<8x32xf32>
    %153 = tpu.matmul %151, %152, %cst_62 {dimension_numbers = #tpu.dot_dimension_numbers<[1], [0], [0], [1], [0, 0, 1, 1], [], []>} : vector<8x32xf32>, vector<32x32xf32>, vector<8x32xf32> -> vector<8x32xf32>
    %c0_63 = arith.constant 0 : index
    %c0_64 = arith.constant 0 : index
    %c0_65 = arith.constant 0 : index
    %154 = vector.load %arg9[%c0_63, %c0_64, %c0_65] : memref<1x8x32xf32, #tpu.memory_space<vmem>>, vector<1x8x32xf32>
    %155 = vector.shape_cast %154 : vector<1x8x32xf32> to vector<8x32xf32>
    %156 = vector.shape_cast %153 : vector<8x32xf32> to vector<1x8x32xf32>
    tpu.vector_store %arg9[%c0_63, %c0_64, %c0_65], %156 {strides = array<i32>} : memref<1x8x32xf32, #tpu.memory_space<vmem>>, vector<1x8x32xf32>,
    return
  }
  func.func @transform_0(%arg0: i32) -> (i32, i32, i32) {
    %c0_i32 = arith.constant 0 : i32
    %c0_i32_0 = arith.constant 0 : i32
    %c0_i32_1 = arith.constant 0 : i32
    return %arg0, %c0_i32, %c0_i32_0 : i32, i32, i32
  }
  func.func @transform_1(%arg0: i32) -> (i32, i32) {
    %c0_i32 = arith.constant 0 : i32
    %c0_i32_0 = arith.constant 0 : i32
    %c0_i32_1 = arith.constant 0 : i32
    return %c0_i32, %c0_i32_0 : i32, i32
  }
  func.func @transform_2(%arg0: i32) -> (i32, i32) {
    %c0_i32 = arith.constant 0 : i32
    %c0_i32_0 = arith.constant 0 : i32
    %c0_i32_1 = arith.constant 0 : i32
    return %c0_i32, %c0_i32_0 : i32, i32
  }
  func.func @transform_3(%arg0: i32) -> (i32, i32) {
    %c0_i32 = arith.constant 0 : i32
    %c0_i32_0 = arith.constant 0 : i32
    %c0_i32_1 = arith.constant 0 : i32
    return %c0_i32, %c0_i32_0 : i32, i32
  }
  func.func @transform_4(%arg0: i32) -> (i32, i32) {
    %c0_i32 = arith.constant 0 : i32
    %c0_i32_0 = arith.constant 0 : i32
    %c0_i32_1 = arith.constant 0 : i32
    return %c0_i32, %c0_i32_0 : i32, i32
  }
  func.func @transform_5(%arg0: i32) -> (i32, i32) {
    %c0_i32 = arith.constant 0 : i32
    %c0_i32_0 = arith.constant 0 : i32
    %c0_i32_1 = arith.constant 0 : i32
    return %c0_i32, %c0_i32_0 : i32, i32
  }
  func.func @transform_6(%arg0: i32) -> (i32, i32, i32) {
    %c0_i32 = arith.constant 0 : i32
    %c0_i32_0 = arith.constant 0 : i32
    %c0_i32_1 = arith.constant 0 : i32
    return %arg0, %c0_i32, %c0_i32_0 : i32, i32, i32
  }
  func.func @transform_7(%arg0: i32) -> (i32, i32, i32) {
    %c0_i32 = arith.constant 0 : i32
    %c0_i32_0 = arith.constant 0 : i32
    %c0_i32_1 = arith.constant 0 : i32
    return %arg0, %c0_i32, %c0_i32_0 : i32, i32, i32
  }
  func.func @transform_8(%arg0: i32) -> (i32, i32, i32) {
    %c0_i32 = arith.constant 0 : i32
    %c0_i32_0 = arith.constant 0 : i32
    %c0_i32_1 = arith.constant 0 : i32
    return %arg0, %c0_i32, %c0_i32_0 : i32, i32, i32
  }
  func.func @transform_9(%arg0: i32) -> (i32, i32, i32) {
    %c0_i32 = arith.constant 0 : i32
    %c0_i32_0 = arith.constant 0 : i32
    %c0_i32_1 = arith.constant 0 : i32
    return %arg0, %c0_i32, %c0_i32_0 : i32, i32, i32
  }
  func.func @transform_10(%arg0: i32) -> (i32, i32, i32) {
    %c0_i32 = arith.constant 0 : i32
    %c0_i32_0 = arith.constant 0 : i32
    %c0_i32_1 = arith.constant 0 : i32
    return %arg0, %c0_i32, %c0_i32_0 : i32, i32, i32
  }
}

</mosaic_0001>

<llo_original>
// kernel: tpu_custom_call.1
$region0: #{tpu_custom_call.1}
  #allocation0 [shape = 'u32[]', space=smem, size = 0x4, offset = 0x4, fixed_abs, tag = 'smem constant byte address 0x4 - core index']
  #allocation1 [shape = 'u32[144,128]{1,0:T(1,128)}', space=vmem, size = 0x12000, scoped, tag = 'internal scratch']
  %s0 = inlined_call_operand.vmem [shape: f32[2,8,32], index: 0, kind: input, shape index: {}]
  %s1 = inlined_call_operand.vmem [shape: f32[32,64], index: 1, kind: input, shape index: {}]
  %s2 = inlined_call_operand.vmem [shape: f32[32,32], index: 2, kind: input, shape index: {}]
  %s3 = inlined_call_operand.vmem [shape: f32[8,8], index: 3, kind: input, shape index: {}]
  %s4 = inlined_call_operand.vmem [shape: f32[8,8], index: 4, kind: input, shape index: {}]
  %s5 = inlined_call_operand.hbm [shape: f32[8,8], index: 5, kind: input, shape index: {}]
  %s6 = inlined_call_operand.hbm [shape: f32[2,16,16], index: 6, kind: input, shape index: {}, may-alias: {6,9}]
  %s7 = inlined_call_operand.hbm [shape: f32[2,16,16], index: 7, kind: input, shape index: {}, may-alias: {7,10}]
  %s8 = inlined_call_operand.hbm [shape: f32[2,8,32], index: 8, kind: output, shape index: {0}]
  %s9 = inlined_call_operand.hbm [shape: f32[2,16,16], index: 9, kind: output, shape index: {1}, may-alias: {6,9}]
  %s10 = inlined_call_operand.hbm [shape: f32[2,16,16], index: 10, kind: output, shape index: {2}, may-alias: {7,10}]
  %11 = xla_tuple %s8, %s9, %s10
  %s12 = sld [smem:[#allocation0]]
  $region93: #{tpu_custom_call.1} parent=0
    _
  %s14 = ssub.s32 1, %s12
  %s15 = scalar_select 0, %s14, %s12
  $region1: #{tpu_custom_call.1} parent=0
    #allocation2 [shape = 'u8[4096]{0}', space=vmem, size = 0x1000, scoped, tag = 'input window, operand 5, single buffered']
    #allocation3 [shape = 's32[2]{0}', space=sflag, size = 0x8, scoped, tag = 'scoped memory for tpu_custom_call.1']
    #allocation4 [shape = 's32[2]{0}', space=sflag, size = 0x8, scoped, tag = 'scoped memory for tpu_custom_call.1']
    #allocation5 [shape = 'u8[16384]{0}', space=vmem, size = 0x4000, scoped, tag = 'input window, operand 6']
    #allocation6 [shape = 's32[2]{0}', space=sflag, size = 0x8, scoped, tag = 'scoped memory for tpu_custom_call.1']
    #allocation7 [shape = 'u8[16384]{0}', space=vmem, size = 0x4000, scoped, tag = 'input window, operand 7']
    #allocation8 [shape = 'u8[8192]{0}', space=vmem, size = 0x2000, scoped, tag = 'output window, operand 0']
    #allocation9 [shape = 'u8[16384]{0}', space=vmem, size = 0x4000, scoped, tag = 'output window, operand 1']
    #allocation10 [shape = 's32[2]{0}', space=sflag, size = 0x8, scoped, tag = 'scoped memory for tpu_custom_call.1']
    #allocation11 [shape = 'u8[16384]{0}', space=vmem, size = 0x4000, scoped, tag = 'output window, operand 2']
    %16 = vsyncpa [#allocation3], 0
    %17 = vsyncpa [#allocation6], 0
    %s18 = scalar_lea.sflag [#allocation6], 1
    %19 = vsyncpa %s18, 0
    %20 = vsyncpa [#allocation4], 0
    %s21 = scalar_lea.sflag [#allocation4], 1
    %22 = vsyncpa %s21, 0
    %23 = vsyncpa [#allocation10], 0
    %s24 = scalar_lea.sflag [#allocation10], 1
    %25 = vsyncpa %s24, 0
    loop: start=0, step=1, limit=4
    $region2: #{tpu_custom_call.1} parent=1 // loop_pre_header
      _
    $region3: #{tpu_custom_call.1} parent=1 // loop_header
      %s27 = sphi 0, %s31
      %p28 = scmp.ge.s32.totalorder %s27, 4
      %s37 = sphi 0, %s39
      %s40 = sphi 0, %s37
      %s41 = sphi 0, %s40
      %s57 = sphi 0, %s41
      %s61 = sphi 0, %s61
      %s63 = sphi 0, %s61
      %s64 = sphi 0, %s63
      %s78 = sphi 0, %s64
      %s82 = sphi 0, %s82
      %s84 = sphi 0, %s82
      %s85 = sphi 0, %s84
      %s99 = sphi 0, %s85
      %s103 = sphi 0, %s103
      %s105 = sphi 0, %s103
      %s106 = sphi 0, %s105
      %s120 = sphi 0, %s106
      %s124 = sphi 0, %s124
      %s126 = sphi 0, %s124
      %s127 = sphi 0, %s126
      %s141 = sphi 0, %s127
      %s145 = sphi 0, %s145
      %s147 = sphi 0, %s145
      %s148 = sphi 0, %s147
      %s162 = sphi 0, %s148
      %s168 = sphi 0, %s170
      %s171 = sphi 0, %s168
      %s172 = sphi 0, %s171
      %s188 = sphi 0, %s172
      %s194 = sphi 0, %s196
      %s197 = sphi 0, %s194
      %s198 = sphi 0, %s197
      %s214 = sphi 0, %s198
      %s220 = sphi 0, %s222
      %s223 = sphi 0, %s220
      %s224 = sphi 0, %s223
      %s240 = sphi 0, %s224
      %s246 = sphi 0, %s248
      %s249 = sphi 0, %s246
      %s250 = sphi 0, %s249
      %s266 = sphi 0, %s250
      %s272 = sphi 0, %s274
      %s275 = sphi 0, %s272
      %s276 = sphi 0, %s275
      %s292 = sphi 0, %s276
    $region4: #{tpu_custom_call.1} parent=1 // loop_header_branch
      %30 = sbr.rel (%p28) target = $region8
    $region5: #{tpu_custom_call.1} parent=1 // loop_body
      %s32 = ssub.s32 %s27, 1
      %s33 = ssub.s32 %s27, 2
      %s34 = sadd.s32 %s27, 1
      %s35 = ssub.s32 %s27, %s34
      %p36 = scmp.eq.s32.totalorder %s35, 0
      %s38 = sadd.s32 %s37, 1
      %s39 = scalar_select %p36, %s37, %s38
      %p42 = pneg %p36
      %p43 = scmp.eq.s32.totalorder %s27, 1
      %p44 = por %p42, %p43
      %p45 = scmp.ne.s32.totalorder %s37, %s40
      %p46 = scmp.eq.s32.totalorder %s27, 0
      %p47 = por %p45, %p46
      %p48 = scmp.ne.s32.totalorder %s37, %s40
      %p49 = scmp.eq.s32.totalorder %s32, 1
      %p50 = por %p48, %p49
      %p51 = scmp.ne.s32.totalorder %s40, %s41
      %p52 = scmp.eq.s32.totalorder %s32, 0
      %p53 = por %p51, %p52
      %p54 = scmp.ne.s32.totalorder %s40, %s41
      %p55 = scmp.eq.s32.totalorder %s33, 1
      %p56 = por %p54, %p55
      %p58 = scmp.ne.s32.totalorder %s41, %s57
      %p59 = scmp.eq.s32.totalorder %s33, 0
      %p60 = por %p58, %p59
      %s62 = sadd.s32 %s61, 1
      %p65 = scmp.eq.s32.totalorder %s27, 1
      %p66 = scmp.ne.s32.totalorder %s61, %s63
      %p67 = scmp.eq.s32.totalorder %s27, 0
      %p68 = por %p66, %p67
      %p69 = scmp.ne.s32.totalorder %s61, %s63
      %p70 = scmp.eq.s32.totalorder %s32, 1
      %p71 = por %p69, %p70
      %p72 = scmp.ne.s32.totalorder %s63, %s64
      %p73 = scmp.eq.s32.totalorder %s32, 0
      %p74 = por %p72, %p73
      %p75 = scmp.ne.s32.totalorder %s63, %s64
      %p76 = scmp.eq.s32.totalorder %s33, 1
      %p77 = por %p75, %p76
      %p79 = scmp.ne.s32.totalorder %s64, %s78
      %p80 = scmp.eq.s32.totalorder %s33, 0
      %p81 = por %p79, %p80
      %s83 = sadd.s32 %s82, 1
      %p86 = scmp.eq.s32.totalorder %s27, 1
      %p87 = scmp.ne.s32.totalorder %s82, %s84
      %p88 = scmp.eq.s32.totalorder %s27, 0
      %p89 = por %p87, %p88
      %p90 = scmp.ne.s32.totalorder %s82, %s84
      %p91 = scmp.eq.s32.totalorder %s32, 1
      %p92 = por %p90, %p91
      %p93 = scmp.ne.s32.totalorder %s84, %s85
      %p94 = scmp.eq.s32.totalorder %s32, 0
      %p95 = por %p93, %p94
      %p96 = scmp.ne.s32.totalorder %s84, %s85
      %p97 = scmp.eq.s32.totalorder %s33, 1
      %p98 = por %p96, %p97
      %p100 = scmp.ne.s32.totalorder %s85, %s99
      %p101 = scmp.eq.s32.totalorder %s33, 0
      %p102 = por %p100, %p101
      %s104 = sadd.s32 %s103, 1
      %p107 = scmp.eq.s32.totalorder %s27, 1
      %p108 = scmp.ne.s32.totalorder %s103, %s105
      %p109 = scmp.eq.s32.totalorder %s27, 0
      %p110 = por %p108, %p109
      %p111 = scmp.ne.s32.totalorder %s103, %s105
      %p112 = scmp.eq.s32.totalorder %s32, 1
      %p113 = por %p111, %p112
      %p114 = scmp.ne.s32.totalorder %s105, %s106
      %p115 = scmp.eq.s32.totalorder %s32, 0
      %p116 = por %p114, %p115
      %p117 = scmp.ne.s32.totalorder %s105, %s106
      %p118 = scmp.eq.s32.totalorder %s33, 1
      %p119 = por %p117, %p118
      %p121 = scmp.ne.s32.totalorder %s106, %s120
      %p122 = scmp.eq.s32.totalorder %s33, 0
      %p123 = por %p121, %p122
      %s125 = sadd.s32 %s124, 1
      %p128 = scmp.eq.s32.totalorder %s27, 1
      %p129 = scmp.ne.s32.totalorder %s124, %s126
      %p130 = scmp.eq.s32.totalorder %s27, 0
      %p131 = por %p129, %p130
      %p132 = scmp.ne.s32.totalorder %s124, %s126
      %p133 = scmp.eq.s32.totalorder %s32, 1
      %p134 = por %p132, %p133
      %p135 = scmp.ne.s32.totalorder %s126, %s127
      %p136 = scmp.eq.s32.totalorder %s32, 0
      %p137 = por %p135, %p136
      %p138 = scmp.ne.s32.totalorder %s126, %s127
      %p139 = scmp.eq.s32.totalorder %s33, 1
      %p140 = por %p138, %p139
      %p142 = scmp.ne.s32.totalorder %s127, %s141
      %p143 = scmp.eq.s32.totalorder %s33, 0
      %p144 = por %p142, %p143
      %s146 = sadd.s32 %s145, 1
      %p149 = scmp.eq.s32.totalorder %s27, 1
      %p150 = scmp.ne.s32.totalorder %s145, %s147
      %p151 = scmp.eq.s32.totalorder %s27, 0
      %p152 = por %p150, %p151
      %p153 = scmp.ne.s32.totalorder %s145, %s147
      %p154 = scmp.eq.s32.totalorder %s32, 1
      %p155 = por %p153, %p154
      %p156 = scmp.ne.s32.totalorder %s147, %s148
      %p157 = scmp.eq.s32.totalorder %s32, 0
      %p158 = por %p156, %p157
      %p159 = scmp.ne.s32.totalorder %s147, %s148
      %p160 = scmp.eq.s32.totalorder %s33, 1
      %p161 = por %p159, %p160
      %p163 = scmp.ne.s32.totalorder %s148, %s162
      %p164 = scmp.eq.s32.totalorder %s33, 0
      %p165 = por %p163, %p164
      %s166 = ssub.s32 %s27, %s34
      %p167 = scmp.eq.s32.totalorder %s166, 0
      %s169 = sadd.s32 %s168, 1
      %s170 = scalar_select %p167, %s168, %s169
      %p173 = pneg %p167
      %p174 = scmp.eq.s32.totalorder %s27, 1
      %p175 = por %p173, %p174
      %p176 = scmp.ne.s32.totalorder %s168, %s171
      %p177 = scmp.eq.s32.totalorder %s27, 0
      %p178 = por %p176, %p177
      %p179 = scmp.ne.s32.totalorder %s168, %s171
      %p180 = scmp.eq.s32.totalorder %s32, 1
      %p181 = por %p179, %p180
      %p182 = scmp.ne.s32.totalorder %s171, %s172
      %p183 = scmp.eq.s32.totalorder %s32, 0
      %p184 = por %p182, %p183
      %p185 = scmp.ne.s32.totalorder %s171, %s172
      %p186 = scmp.eq.s32.totalorder %s33, 1
      %p187 = por %p185, %p186
      %p189 = scmp.ne.s32.totalorder %s172, %s188
      %p190 = scmp.eq.s32.totalorder %s33, 0
      %p191 = por %p189, %p190
      %s192 = ssub.s32 %s27, %s34
      %p193 = scmp.eq.s32.totalorder %s192, 0
      %s195 = sadd.s32 %s194, 1
      %s196 = scalar_select %p193, %s194, %s195
      %p199 = pneg %p193
      %p200 = scmp.eq.s32.totalorder %s27, 1
      %p201 = por %p199, %p200
      %p202 = scmp.ne.s32.totalorder %s194, %s197
      %p203 = scmp.eq.s32.totalorder %s27, 0
      %p204 = por %p202, %p203
      %p205 = scmp.ne.s32.totalorder %s194, %s197
      %p206 = scmp.eq.s32.totalorder %s32, 1
      %p207 = por %p205, %p206
      %p208 = scmp.ne.s32.totalorder %s197, %s198
      %p209 = scmp.eq.s32.totalorder %s32, 0
      %p210 = por %p208, %p209
      %p211 = scmp.ne.s32.totalorder %s197, %s198
      %p212 = scmp.eq.s32.totalorder %s33, 1
      %p213 = por %p211, %p212
      %p215 = scmp.ne.s32.totalorder %s198, %s214
      %p216 = scmp.eq.s32.totalorder %s33, 0
      %p217 = por %p215, %p216
      %s218 = ssub.s32 %s27, %s34
      %p219 = scmp.eq.s32.totalorder %s218, 0
      %s221 = sadd.s32 %s220, 1
      %s222 = scalar_select %p219, %s220, %s221
      %p225 = pneg %p219
      %p226 = scmp.eq.s32.totalorder %s27, 1
      %p227 = por %p225, %p226
      %p228 = scmp.ne.s32.totalorder %s220, %s223
      %p229 = scmp.eq.s32.totalorder %s27, 0
      %p230 = por %p228, %p229
      %p231 = scmp.ne.s32.totalorder %s220, %s223
      %p232 = scmp.eq.s32.totalorder %s32, 1
      %p233 = por %p231, %p232
      %p234 = scmp.ne.s32.totalorder %s223, %s224
      %p235 = scmp.eq.s32.totalorder %s32, 0
      %p236 = por %p234, %p235
      %p237 = scmp.ne.s32.totalorder %s223, %s224
      %p238 = scmp.eq.s32.totalorder %s33, 1
      %p239 = por %p237, %p238
      %p241 = scmp.ne.s32.totalorder %s224, %s240
      %p242 = scmp.eq.s32.totalorder %s33, 0
      %p243 = por %p241, %p242
      %s244 = ssub.s32 %s27, %s34
      %p245 = scmp.eq.s32.totalorder %s244, 0
      %s247 = sadd.s32 %s246, 1
      %s248 = scalar_select %p245, %s246, %s247
      %p251 = pneg %p245
      %p252 = scmp.eq.s32.totalorder %s27, 1
      %p253 = por %p251, %p252
      %p254 = scmp.ne.s32.totalorder %s246, %s249
      %p255 = scmp.eq.s32.totalorder %s27, 0
      %p256 = por %p254, %p255
      %p257 = scmp.ne.s32.totalorder %s246, %s249
      %p258 = scmp.eq.s32.totalorder %s32, 1
      %p259 = por %p257, %p258
      %p260 = scmp.ne.s32.totalorder %s249, %s250
      %p261 = scmp.eq.s32.totalorder %s32, 0
      %p262 = por %p260, %p261
      %p263 = scmp.ne.s32.totalorder %s249, %s250
      %p264 = scmp.eq.s32.totalorder %s33, 1
      %p265 = por %p263, %p264
      %p267 = scmp.ne.s32.totalorder %s250, %s266
      %p268 = scmp.eq.s32.totalorder %s33, 0
      %p269 = por %p267, %p268
      %s270 = ssub.s32 %s27, %s34
      %p271 = scmp.eq.s32.totalorder %s270, 0
      %s273 = sadd.s32 %s272, 1
      %s274 = scalar_select %p271, %s272, %s273
      %p277 = pneg %p271
      %p278 = scmp.eq.s32.totalorder %s27, 1
      %p279 = por %p277, %p278
      %p280 = scmp.ne.s32.totalorder %s272, %s275
      %p281 = scmp.eq.s32.totalorder %s27, 0
      %p282 = por %p280, %p281
      %p283 = scmp.ne.s32.totalorder %s272, %s275
      %p284 = scmp.eq.s32.totalorder %s32, 1
      %p285 = por %p283, %p284
      %p286 = scmp.ne.s32.totalorder %s275, %s276
      %p287 = scmp.eq.s32.totalorder %s32, 0
      %p288 = por %p286, %p287
      %p289 = scmp.ne.s32.totalorder %s275, %s276
      %p290 = scmp.eq.s32.totalorder %s33, 1
      %p291 = por %p289, %p290
      %p293 = scmp.ne.s32.totalorder %s276, %s292
      %p294 = scmp.eq.s32.totalorder %s33, 0
      %p295 = por %p293, %p294
      %p296 = scmp.le.s32.totalorder 1, %s27
      %p297 = scmp.lt.s32.totalorder %s27, 3
      %p298 = pnand %p296, %p297
      %p299 = pneg %p298
      // Predicated region
      $region9: #{tpu_custom_call.1} parent=5 // pred_check
        _
      $region10: #{tpu_custom_call.1} parent=5 // pred_check_branch
        %301 = sbr.rel (%p298) target = $region12
      $region11: #{tpu_custom_call.1} parent=5 // pred_region
        %s302 = ssub.s32 %s27, 1
        // Predicated region
        $region13: #{tpu_custom_call.1} parent=11 // pred_check
          %p303 = pneg %p74
        $region14: #{tpu_custom_call.1} parent=11 // pred_check_branch
          %305 = sbr.rel (%p303) target = $region16
        $region15: #{tpu_custom_call.1} parent=11 // pred_region
          _
        $region16: #{tpu_custom_call.1} parent=11 // pred_fallthru
          _
        // Predicated region
        $region17: #{tpu_custom_call.1} parent=11 // pred_check
          %p306 = pneg %p95
        $region18: #{tpu_custom_call.1} parent=11 // pred_check_branch
          %308 = sbr.rel (%p306) target = $region20
        $region19: #{tpu_custom_call.1} parent=11 // pred_region
          _
        $region20: #{tpu_custom_call.1} parent=11 // pred_fallthru
          _
        // Predicated region
        $region21: #{tpu_custom_call.1} parent=11 // pred_check
          %p309 = pneg %p116
        $region22: #{tpu_custom_call.1} parent=11 // pred_check_branch
          %311 = sbr.rel (%p309) target = $region24
        $region23: #{tpu_custom_call.1} parent=11 // pred_region
          _
        $region24: #{tpu_custom_call.1} parent=11 // pred_fallthru
          _
        // Predicated region
        $region25: #{tpu_custom_call.1} parent=11 // pred_check
          %p312 = pneg %p137
        $region26: #{tpu_custom_call.1} parent=11 // pred_check_branch
          %314 = sbr.rel (%p312) target = $region28
        $region27: #{tpu_custom_call.1} parent=11 // pred_region
          _
        $region28: #{tpu_custom_call.1} parent=11 // pred_fallthru
          _
        // Predicated region
        $region29: #{tpu_custom_call.1} parent=11 // pred_check
          %p315 = pneg %p158
        $region30: #{tpu_custom_call.1} parent=11 // pred_check_branch
          %317 = sbr.rel (%p315) target = $region32
        $region31: #{tpu_custom_call.1} parent=11 // pred_region
          %s319 = ssub.s32 128, 128
          %320 = vsyncadd [#allocation3], %s319
          %s322 = sshll.u32 [#allocation2], 4
          %s323 = int_to_ptr.vmem [resolvable:$true] %s322
          %325 = dma.hbm_to_vmem [thread:$0]  %s5, 128, %s323, [#allocation3]
        $region32: #{tpu_custom_call.1} parent=11 // pred_fallthru
          _
      $region12: #{tpu_custom_call.1} parent=5 // pred_fallthru
        _
      %p326 = scmp.lt.s32.totalorder %s27, 2
      // Predicated region
      $region33: #{tpu_custom_call.1} parent=5 // pred_check
        %p327 = pneg %p326
      $region34: #{tpu_custom_call.1} parent=5 // pred_check_branch
        %329 = sbr.rel (%p327) target = $region36
      $region35: #{tpu_custom_call.1} parent=5 // pred_region
        // Predicated region
        $region37: #{tpu_custom_call.1} parent=35 // pred_check
          %p330 = pneg %p47
        $region38: #{tpu_custom_call.1} parent=35 // pred_check_branch
          %332 = sbr.rel (%p330) target = $region40
        $region39: #{tpu_custom_call.1} parent=35 // pred_region
          %p333 = scmp.lt.s32.totalorder %s27, 1
          %s334 = scalar_select %p333, %s27, 1
          %s335 = smul.addr %s334, 8
          %s336 = scalar_lea.vmem %s0, %s335
        $region40: #{tpu_custom_call.1} parent=35 // pred_fallthru
          _
        // Predicated region
        $region41: #{tpu_custom_call.1} parent=35 // pred_check
          %p337 = pneg %p178
        $region42: #{tpu_custom_call.1} parent=35 // pred_check_branch
          %339 = sbr.rel (%p337) target = $region44
        $region43: #{tpu_custom_call.1} parent=35 // pred_region
          %s340 = sand.u32 %s27, 1
          %s341 = scalar_lea.sflag [#allocation6], %s340
          %s342 = sand.u32 %s168, 1
          %s343 = smul.addr %s342, 16
          %s344 = scalar_lea.vmem [#allocation5], %s343
          %s346 = ssub.s32 256, 256
          %347 = vsyncadd %s341, %s346
          %s348 = smul.addr %s27, 2
          %s349 = smul.addr %s348, 128
          %s350 = scalar_lea.hbm %s6, %s349
          %s351 = sshll.u32 %s344, 4
          %s352 = int_to_ptr.vmem [resolvable:$true] %s351
          %357 = dma.hbm_to_vmem [thread:$0]  %s350, 256, %s352, %s341, 128, 128, 8
        $region44: #{tpu_custom_call.1} parent=35 // pred_fallthru
          _
        // Predicated region
        $region45: #{tpu_custom_call.1} parent=35 // pred_check
          %p358 = pneg %p204
        $region46: #{tpu_custom_call.1} parent=35 // pred_check_branch
          %360 = sbr.rel (%p358) target = $region48
        $region47: #{tpu_custom_call.1} parent=35 // pred_region
          %s361 = sand.u32 %s27, 1
          %s362 = scalar_lea.sflag [#allocation6], %s361
          %s363 = sand.u32 %s194, 1
          %s364 = smul.addr %s363, 16
          %s365 = scalar_lea.vmem [#allocation7], %s364
          %s367 = ssub.s32 256, 256
          %368 = vsyncadd %s362, %s367
          %s369 = smul.addr %s27, 2
          %s370 = smul.addr %s369, 128
          %s371 = scalar_lea.hbm %s7, %s370
          %s372 = sshll.u32 %s365, 4
          %s373 = int_to_ptr.vmem [resolvable:$true] %s372
          %378 = dma.hbm_to_vmem [thread:$0]  %s371, 256, %s373, %s362, 128, 128, 8
        $region48: #{tpu_custom_call.1} parent=35 // pred_fallthru
          _
      $region36: #{tpu_custom_call.1} parent=5 // pred_fallthru
        _
      %p379 = scmp.le.s32.totalorder 1, %s27
      %p380 = scmp.lt.s32.totalorder %s27, 3
      %p381 = pnand %p379, %p380
      %p382 = pneg %p381
      // Predicated region
      $region49: #{tpu_custom_call.1} parent=5 // pred_check
        _
      $region50: #{tpu_custom_call.1} parent=5 // pred_check_branch
        %384 = sbr.rel (%p381) target = $region52
      $region51: #{tpu_custom_call.1} parent=5 // pred_region
        %s385 = ssub.s32 %s27, 1
        // Predicated region
        $region53: #{tpu_custom_call.1} parent=51 // pred_check
          %p386 = pneg %p158
        $region54: #{tpu_custom_call.1} parent=51 // pred_check_branch
          %388 = sbr.rel (%p386) target = $region56
        $region55: #{tpu_custom_call.1} parent=51 // pred_region
          %389 = dma.done [#allocation3], 128
        $region56: #{tpu_custom_call.1} parent=51 // pred_fallthru
          _
        %s390 = sand.u32 %s32, 1
        %s391 = scalar_lea.sflag [#allocation6], %s390
        %s392 = sand.u32 %s171, 1
        %s393 = smul.addr %s392, 16
        %s394 = scalar_lea.vmem [#allocation5], %s393
        // Predicated region
        $region57: #{tpu_custom_call.1} parent=51 // pred_check
          %p395 = pneg %p184
        $region58: #{tpu_custom_call.1} parent=51 // pred_check_branch
          %397 = sbr.rel (%p395) target = $region60
        $region59: #{tpu_custom_call.1} parent=51 // pred_region
          %398 = dma.done %s391, 256
        $region60: #{tpu_custom_call.1} parent=51 // pred_fallthru
          _
        %s399 = sand.u32 %s32, 1
        %s400 = scalar_lea.sflag [#allocation6], %s399
        %s401 = sand.u32 %s197, 1
        %s402 = smul.addr %s401, 16
        %s403 = scalar_lea.vmem [#allocation7], %s402
        // Predicated region
        $region61: #{tpu_custom_call.1} parent=51 // pred_check
          %p404 = pneg %p210
        $region62: #{tpu_custom_call.1} parent=51 // pred_check_branch
          %406 = sbr.rel (%p404) target = $region64
        $region63: #{tpu_custom_call.1} parent=51 // pred_region
          %407 = dma.done %s400, 256
        $region64: #{tpu_custom_call.1} parent=51 // pred_fallthru
          _
        %p408 = scmp.lt.s32.totalorder %s32, 1
        %s409 = scalar_select %p408, %s32, 1
        %s410 = smul.addr %s409, 8
        %s411 = scalar_lea.vmem %s0, %s410
        %p412 = pneg %p53
        %p413 = pneg %p50
        %p414 = pneg %p74
        %p415 = pneg %p71
        %p416 = pneg %p95
        %p417 = pneg %p92
        %p418 = pneg %p116
        %p419 = pneg %p113
        %p420 = pneg %p137
        %p421 = pneg %p134
        %p422 = pneg %p158
        %p423 = pneg %p155
        %s424 = sand.u32 %s32, 1
        %s425 = scalar_lea.sflag [#allocation6], %s424
        %s426 = sand.u32 %s171, 1
        %s427 = smul.addr %s426, 16
        %s428 = scalar_lea.vmem [#allocation5], %s427
        %p429 = pneg %p184
        %p430 = pneg %p181
        %s431 = sand.u32 %s32, 1
        %s432 = scalar_lea.sflag [#allocation6], %s431
        %s433 = sand.u32 %s197, 1
        %s434 = smul.addr %s433, 16
        %s435 = scalar_lea.vmem [#allocation7], %s434
        %p436 = pneg %p210
        %p437 = pneg %p207
        %p438 = pneg %p236
        %p439 = pneg %p233
        %s440 = sand.u32 %s223, 1
        %s441 = scalar_lea.sflag [#allocation4], %s440
        %s442 = sand.u32 %s223, 1
        %s443 = smul.addr %s442, 8
        %s444 = scalar_lea.vmem [#allocation8], %s443
        %p445 = pneg %p262
        %p446 = pneg %p259
        %s447 = sand.u32 %s32, 1
        %s448 = scalar_lea.sflag [#allocation10], %s447
        %s449 = sand.u32 %s249, 1
        %s450 = smul.addr %s449, 16
        %s451 = scalar_lea.vmem [#allocation9], %s450
        %p452 = pneg %p288
        %p453 = pneg %p285
        %s454 = sand.u32 %s32, 1
        %s455 = scalar_lea.sflag [#allocation10], %s454
        %s456 = sand.u32 %s275, 1
        %s457 = smul.addr %s456, 16
        %s458 = scalar_lea.vmem [#allocation11], %s457
        %p459 = scmp.lt.s32.totalorder %s32, 1
        %s460 = scalar_select %p459, %s32, 1
        %s461 = smul.addr %s460, 8
        %s462 = scalar_lea.vmem %s0, %s461
        %v463 = vld [vmem:[%s462] sm:$0xff]
        %v464 = vld [vmem:[%s1] sm:$0xff]
        %v465 = vld [vmem:[%s1 + $0x8] sm:$0xff]
        %v466 = vld [vmem:[%s1 + $0x10] sm:$0xff]
        %v467 = vld [vmem:[%s1 + $0x18] sm:$0xff]
        %vm468 = vcmask 261120
        %v470 = vsel %vm468, %v463, 0
        %472 = vmatprep.subr.mxu0 0.0
        %473 = vmatpush1.msra.mxu0 %v464
        %474 = vmatprep.subr.mxu0 0.0
        %475 = vmatpush1.msra.mxu0 %v465
        %476 = vmatprep.subr.mxu0 0.0
        %477 = vmatpush1.msra.mxu0 %v466
        %478 = vmatprep.subr.mxu0 0.0
        %479 = vmatpush1.msra.mxu0 %v467
        %480 = vmatprep.subr.mxu0 0.0
        %481 = vmatpush1.msra.mxu0 0.0
        %482 = vmatprep.subr.mxu0 0.0
        %483 = vmatpush1.msra.mxu0 0.0
        %484 = vmatprep.subr.mxu0 0.0
        %485 = vmatpush1.msra.mxu0 0.0
        %486 = vmatprep.subr.mxu0 0.0
        %487 = vmatpush1.msra.mxu0 0.0
        %488 = vmatprep.subr.mxu0 0.0
        %489 = vmatpush1.msra.mxu0 0.0
        %490 = vmatprep.subr.mxu0 0.0
        %491 = vmatpush1.msra.mxu0 0.0
        %492 = vmatprep.subr.mxu0 0.0
        %493 = vmatpush1.msra.mxu0 0.0
        %494 = vmatprep.subr.mxu0 0.0
        %495 = vmatpush1.msra.mxu0 0.0
        %496 = vmatprep.subr.mxu0 0.0
        %497 = vmatpush1.msra.mxu0 0.0
        %498 = vmatprep.subr.mxu0 0.0
        %499 = vmatpush1.msra.mxu0 0.0
        %500 = vmatprep.subr.mxu0 0.0
        %501 = vmatpush1.msra.mxu0 0.0
        %502 = vmatprep.subr.mxu0 0.0
        %503 = vmatpush1.msra.mxu0 0.0
        %504 = vmatprep.subr.mxu0 0.0
        %505 = vmatpush1.msra.mxu0 0.0
        %506 = vmatprep.subr.mxu0 0.0
        %507 = vmatpush1.msra.mxu0 0.0
        %508 = vmatprep.subr.mxu0 0.0
        %509 = vmatpush1.msra.mxu0 0.0
        %510 = vmatprep.subr.mxu0 0.0
        %511 = vmatpush1.msra.mxu0 0.0
        %512 = vmatprep.subr.mxu0 0.0
        %513 = vmatpush1.msra.mxu0 0.0
        %514 = vmatprep.subr.mxu0 0.0
        %515 = vmatpush1.msra.mxu0 0.0
        %516 = vmatprep.subr.mxu0 0.0
        %517 = vmatpush1.msra.mxu0 0.0
        %518 = vmatprep.subr.mxu0 0.0
        %519 = vmatpush1.msra.mxu0 0.0
        %520 = vmatprep.subr.mxu0 0.0
        %521 = vmatpush1.msra.mxu0 0.0
        %522 = vmatprep.subr.mxu0 0.0
        %523 = vmatpush1.msra.mxu0 0.0
        %524 = vmatprep.subr.mxu0 0.0
        %525 = vmatpush1.msra.mxu0 0.0
        %526 = vmatprep.subr.mxu0 0.0
        %527 = vmatpush1.msra.mxu0 0.0
        %528 = vmatprep.subr.mxu0 0.0
        %529 = vmatpush1.msra.mxu0 0.0
        %530 = vmatprep.subr.mxu0 0.0
        %531 = vmatpush1.msra.mxu0 0.0
        %532 = vmatprep.subr.mxu0 0.0
        %533 = vmatpush1.msra.mxu0 0.0
        %534 = vmatprep.subr.mxu0 0.0
        %535 = vmatpush1.msra.mxu0 0.0
        %536 = vmatprep.mubr.f32.mxu0 0.0
        %537 = vmatmul.mubr.f32.gmra.mrb[0].mxu0 %v470
        %v538 = vpop.f32.mrb[0].mxu0
        %v539 = vadd.f32 0.0, %v538
        %v540 = vpop.f32.mrb[0].mxu0
        %541 = vdwg.mxu0
        %v542 = vld [vmem:[%s3] sm:$0xff]
        %v543 = vld [vmem:[%s4] sm:$0xff]
        %v544 = vsub.f32 0.0, %v539
        %546 = vrot.lane.b32.xlu0 %v544, 92
        %v547 = vpop.permute.xlu0 %546
        %550 = vrot.lane.b32.xlu0 %v539, 100
        %v551 = vpop.permute.xlu0 %550
        %vm553 = vcmask 31744
        %v554 = vsel %vm553, %v547, %v551
        %556 = vrot.lane.b32.xlu0 %v542, 32
        %v557 = vpop.permute.xlu0 %556
        %v559 = vmul.f32 %v539, %v557
        %v560 = vmul.f32 %v554, %v543
        %562 = vrot.lane.b32.xlu0 %v560, 32
        %v563 = vpop.permute.xlu0 %562
        %v565 = vadd.f32 %v559, %v563
        %566 = vrot.lane.b32.xlu0 %v544, 84
        %v567 = vpop.permute.xlu0 %566
        %569 = vrot.lane.b32.xlu0 %v539, 92
        %v570 = vpop.permute.xlu0 %569
        %v572 = vsel %vm553, %v567, %v570
        %573 = vrot.lane.b32.xlu0 %v542, 40
        %v574 = vpop.permute.xlu0 %573
        %v576 = vmul.f32 %v539, %v574
        %v577 = vmul.f32 %v572, %v543
        %579 = vrot.lane.b32.xlu0 %v577, 40
        %v580 = vpop.permute.xlu0 %579
        %v582 = vadd.f32 %v576, %v580
        %584 = vrot.lane.b32.xlu0 %v565, 96
        %v585 = vpop.permute.xlu0 %584
        %588 = vrot.lane.b32.xlu0 %v582, 96
        %v589 = vpop.permute.xlu0 %588
        %vm591 = vcmask 64512
        %v592 = vsel %vm591, %v585, %v589
        %v593 = vld [vmem:[%s394] sm:$0xff]
        %v594 = vld [vmem:[%s394 + $0x8] sm:$0xff]
        %vm595 = vcmask 130048
        %596 = vst.msk [vmem:[%s451] sm:$0xff] %vm595, %v593
        %597 = vst.msk [vmem:[%s451 + $0x8] sm:$0xff] %vm595, %v594
        %v598 = vld [vmem:[%s403] sm:$0xff]
        %v599 = vld [vmem:[%s403 + $0x8] sm:$0xff]
        %600 = vst.msk [vmem:[%s458] sm:$0xff] %vm595, %v598
        %601 = vst.msk [vmem:[%s458 + $0x8] sm:$0xff] %vm595, %v599
        %602 = vst.msk [vmem:[%s451] sm:$0xff] %vm595, %v592
        %603 = vrot.lane.b32.xlu0 %v539, 80
        %v604 = vpop.permute.xlu0 %603
        %606 = vst.msk [vmem:[%s458] sm:$0xff] %vm595, %v604
        %v607 = vld [vmem:[%s451] sm:$0xff]
        %v608 = vld [vmem:[%s458] sm:$0xff]
        %v609 = vld [vmem:[#allocation2] sm:$0xff]
        %610 = vrot.lane.b32.xlu0 %v544, 124
        %v611 = vpop.permute.xlu0 %610
        %613 = vrot.lane.b32.xlu0 %v539, 4
        %v614 = vpop.permute.xlu0 %613
        %v616 = vsel %vm553, %v611, %v614
        %v617 = vmul.f32 %v539, %v542
        %v618 = vmul.f32 %v616, %v543
        %v619 = vadd.f32 %v617, %v618
        %v621 = vsel %vm591, %v619, 0
        %v624 = vsel %vm591, %v607, 0
        %626 = vmatprep.subr.mxu0 0.0
        %627 = vmatpush1.xpose.msra.mxu0 %v624
        %628 = vmatprep.subr.mxu0 0.0
        %629 = vmatpush1.xpose.msra.mxu0 0.0
        %630 = vmatprep.subr.mxu0 0.0
        %631 = vmatpush1.xpose.msra.mxu0 0.0
        %632 = vmatprep.subr.mxu0 0.0
        %633 = vmatpush1.xpose.msra.mxu0 0.0
        %634 = vmatprep.subr.mxu0 0.0
        %635 = vmatpush1.xpose.msra.mxu0 0.0
        %636 = vmatprep.subr.mxu0 0.0
        %637 = vmatpush1.xpose.msra.mxu0 0.0
        %638 = vmatprep.subr.mxu0 0.0
        %639 = vmatpush1.xpose.msra.mxu0 0.0
        %640 = vmatprep.subr.mxu0 0.0
        %641 = vmatpush1.xpose.msra.mxu0 0.0
        %642 = vmatprep.subr.mxu0 0.0
        %643 = vmatpush1.xpose.msra.mxu0 0.0
        %644 = vmatprep.subr.mxu0 0.0
        %645 = vmatpush1.xpose.msra.mxu0 0.0
        %646 = vmatprep.subr.mxu0 0.0
        %647 = vmatpush1.xpose.msra.mxu0 0.0
        %648 = vmatprep.subr.mxu0 0.0
        %649 = vmatpush1.xpose.msra.mxu0 0.0
        %650 = vmatprep.subr.mxu0 0.0
        %651 = vmatpush1.xpose.msra.mxu0 0.0
        %652 = vmatprep.subr.mxu0 0.0
        %653 = vmatpush1.xpose.msra.mxu0 0.0
        %654 = vmatprep.subr.mxu0 0.0
        %655 = vmatpush1.xpose.msra.mxu0 0.0
        %656 = vmatprep.subr.mxu0 0.0
        %657 = vmatpush1.xpose.msra.mxu0 0.0
        %658 = vmatprep.subr.mxu0 0.0
        %659 = vmatpush1.xpose.msra.mxu0 0.0
        %660 = vmatprep.subr.mxu0 0.0
        %661 = vmatpush1.xpose.msra.mxu0 0.0
        %662 = vmatprep.subr.mxu0 0.0
        %663 = vmatpush1.xpose.msra.mxu0 0.0
        %664 = vmatprep.subr.mxu0 0.0
        %665 = vmatpush1.xpose.msra.mxu0 0.0
        %666 = vmatprep.subr.mxu0 0.0
        %667 = vmatpush1.xpose.msra.mxu0 0.0
        %668 = vmatprep.subr.mxu0 0.0
        %669 = vmatpush1.xpose.msra.mxu0 0.0
        %670 = vmatprep.subr.mxu0 0.0
        %671 = vmatpush1.xpose.msra.mxu0 0.0
        %672 = vmatprep.subr.mxu0 0.0
        %673 = vmatpush1.xpose.msra.mxu0 0.0
        %674 = vmatprep.subr.mxu0 0.0
        %675 = vmatpush1.xpose.msra.mxu0 0.0
        %676 = vmatprep.subr.mxu0 0.0
        %677 = vmatpush1.xpose.msra.mxu0 0.0
        %678 = vmatprep.subr.mxu0 0.0
        %679 = vmatpush1.xpose.msra.mxu0 0.0
        %680 = vmatprep.subr.mxu0 0.0
        %681 = vmatpush1.xpose.msra.mxu0 0.0
        %682 = vmatprep.subr.mxu0 0.0
        %683 = vmatpush1.xpose.msra.mxu0 0.0
        %684 = vmatprep.subr.mxu0 0.0
        %685 = vmatpush1.xpose.msra.mxu0 0.0
        %686 = vmatprep.subr.mxu0 0.0
        %687 = vmatpush1.xpose.msra.mxu0 0.0
        %688 = vmatprep.subr.mxu0 0.0
        %689 = vmatpush1.xpose.msra.mxu0 0.0
        %690 = vmatprep.mubr.f32.mxu0 0.0
        %691 = vmatmul.mubr.f32.gmra.mrb[0].mxu0 %v621
        %v692 = vpop.f32.mrb[0].mxu0
        %v693 = vadd.f32 0.0, %v692
        %v694 = vpop.f32.mrb[0].mxu0
        %695 = vdwg.mxu0
        %v696 = vmul.f32 %v693, 0.35355338
        %v697 = vadd.f32 %v696, %v609
        %v698 = vsel %vm591, %v697, -inf
        %699 = vmax.xlane.f32.xlu0 %v698
        %v700 = vpop.xlane.xlu0 %699
        %v701 = vsub.f32 %v697, %v700
        %v702 = vmul.f32 %v701, 1.442695
        %v703 = vpow.pop %v702
        %v704 = vsel %vm591, %v703, 0.0
        %705 = vadd.xlane.f32.xlu0 %v704
        %v706 = vpop.xlane.xlu0 %705
        %v707 = vrcp.pop %v706
        %v708 = vmul.f32 %v703, %v707
        %v710 = vsel %vm591, %v708, 0
        %712 = vmatprep.subr.mxu0 0.0
        %713 = vmatpush1.msra.mxu0 %v608
        %714 = vmatprep.subr.mxu0 0.0
        %715 = vmatpush1.msra.mxu0 0.0
        %716 = vmatprep.subr.mxu0 0.0
        %717 = vmatpush1.msra.mxu0 0.0
        %718 = vmatprep.subr.mxu0 0.0
        %719 = vmatpush1.msra.mxu0 0.0
        %720 = vmatprep.subr.mxu0 0.0
        %721 = vmatpush1.msra.mxu0 0.0
        %722 = vmatprep.subr.mxu0 0.0
        %723 = vmatpush1.msra.mxu0 0.0
        %724 = vmatprep.subr.mxu0 0.0
        %725 = vmatpush1.msra.mxu0 0.0
        %726 = vmatprep.subr.mxu0 0.0
        %727 = vmatpush1.msra.mxu0 0.0
        %728 = vmatprep.subr.mxu0 0.0
        %729 = vmatpush1.msra.mxu0 0.0
        %730 = vmatprep.subr.mxu0 0.0
        %731 = vmatpush1.msra.mxu0 0.0
        %732 = vmatprep.subr.mxu0 0.0
        %733 = vmatpush1.msra.mxu0 0.0
        %734 = vmatprep.subr.mxu0 0.0
        %735 = vmatpush1.msra.mxu0 0.0
        %736 = vmatprep.subr.mxu0 0.0
        %737 = vmatpush1.msra.mxu0 0.0
        %738 = vmatprep.subr.mxu0 0.0
        %739 = vmatpush1.msra.mxu0 0.0
        %740 = vmatprep.subr.mxu0 0.0
        %741 = vmatpush1.msra.mxu0 0.0
        %742 = vmatprep.subr.mxu0 0.0
        %743 = vmatpush1.msra.mxu0 0.0
        %744 = vmatprep.subr.mxu0 0.0
        %745 = vmatpush1.msra.mxu0 0.0
        %746 = vmatprep.subr.mxu0 0.0
        %747 = vmatpush1.msra.mxu0 0.0
        %748 = vmatprep.subr.mxu0 0.0
        %749 = vmatpush1.msra.mxu0 0.0
        %750 = vmatprep.subr.mxu0 0.0
        %751 = vmatpush1.msra.mxu0 0.0
        %752 = vmatprep.subr.mxu0 0.0
        %753 = vmatpush1.msra.mxu0 0.0
        %754 = vmatprep.subr.mxu0 0.0
        %755 = vmatpush1.msra.mxu0 0.0
        %756 = vmatprep.subr.mxu0 0.0
        %757 = vmatpush1.msra.mxu0 0.0
        %758 = vmatprep.subr.mxu0 0.0
        %759 = vmatpush1.msra.mxu0 0.0
        %760 = vmatprep.subr.mxu0 0.0
        %761 = vmatpush1.msra.mxu0 0.0
        %762 = vmatprep.subr.mxu0 0.0
        %763 = vmatpush1.msra.mxu0 0.0
        %764 = vmatprep.subr.mxu0 0.0
        %765 = vmatpush1.msra.mxu0 0.0
        %766 = vmatprep.subr.mxu0 0.0
        %767 = vmatpush1.msra.mxu0 0.0
        %768 = vmatprep.subr.mxu0 0.0
        %769 = vmatpush1.msra.mxu0 0.0
        %770 = vmatprep.subr.mxu0 0.0
        %771 = vmatpush1.msra.mxu0 0.0
        %772 = vmatprep.subr.mxu0 0.0
        %773 = vmatpush1.msra.mxu0 0.0
        %774 = vmatprep.subr.mxu0 0.0
        %775 = vmatpush1.msra.mxu0 0.0
        %776 = vmatprep.mubr.f32.mxu0 0.0
        %777 = vmatmul.mubr.f32.gmra.mrb[0].mxu0 %v710
        %v778 = vpop.f32.mrb[0].mxu0
        %v779 = vadd.f32 0.0, %v778
        %v780 = vpop.f32.mrb[0].mxu0
        %781 = vdwg.mxu0
        %782 = vrot.lane.b32.xlu0 %v544, 116
        %v783 = vpop.permute.xlu0 %782
        %785 = vrot.lane.b32.xlu0 %v539, 124
        %v786 = vpop.permute.xlu0 %785
        %v788 = vsel %vm553, %v783, %v786
        %789 = vrot.lane.b32.xlu0 %v542, 8
        %v790 = vpop.permute.xlu0 %789
        %v792 = vmul.f32 %v539, %v790
        %v793 = vmul.f32 %v788, %v543
        %795 = vrot.lane.b32.xlu0 %v793, 8
        %v796 = vpop.permute.xlu0 %795
        %v798 = vadd.f32 %v792, %v796
        %800 = vrot.lane.b32.xlu0 %v798, 120
        %v801 = vpop.permute.xlu0 %800
        %v802 = vsel %vm591, %v801, 0
        %804 = vmatprep.subr.mxu0 0.0
        %805 = vmatpush1.xpose.msra.mxu0 %v624
        %806 = vmatprep.subr.mxu0 0.0
        %807 = vmatpush1.xpose.msra.mxu0 0.0
        %808 = vmatprep.subr.mxu0 0.0
        %809 = vmatpush1.xpose.msra.mxu0 0.0
        %810 = vmatprep.subr.mxu0 0.0
        %811 = vmatpush1.xpose.msra.mxu0 0.0
        %812 = vmatprep.subr.mxu0 0.0
        %813 = vmatpush1.xpose.msra.mxu0 0.0
        %814 = vmatprep.subr.mxu0 0.0
        %815 = vmatpush1.xpose.msra.mxu0 0.0
        %816 = vmatprep.subr.mxu0 0.0
        %817 = vmatpush1.xpose.msra.mxu0 0.0
        %818 = vmatprep.subr.mxu0 0.0
        %819 = vmatpush1.xpose.msra.mxu0 0.0
        %820 = vmatprep.subr.mxu0 0.0
        %821 = vmatpush1.xpose.msra.mxu0 0.0
        %822 = vmatprep.subr.mxu0 0.0
        %823 = vmatpush1.xpose.msra.mxu0 0.0
        %824 = vmatprep.subr.mxu0 0.0
        %825 = vmatpush1.xpose.msra.mxu0 0.0
        %826 = vmatprep.subr.mxu0 0.0
        %827 = vmatpush1.xpose.msra.mxu0 0.0
        %828 = vmatprep.subr.mxu0 0.0
        %829 = vmatpush1.xpose.msra.mxu0 0.0
        %830 = vmatprep.subr.mxu0 0.0
        %831 = vmatpush1.xpose.msra.mxu0 0.0
        %832 = vmatprep.subr.mxu0 0.0
        %833 = vmatpush1.xpose.msra.mxu0 0.0
        %834 = vmatprep.subr.mxu0 0.0
        %835 = vmatpush1.xpose.msra.mxu0 0.0
        %836 = vmatprep.subr.mxu0 0.0
        %837 = vmatpush1.xpose.msra.mxu0 0.0
        %838 = vmatprep.subr.mxu0 0.0
        %839 = vmatpush1.xpose.msra.mxu0 0.0
        %840 = vmatprep.subr.mxu0 0.0
        %841 = vmatpush1.xpose.msra.mxu0 0.0
        %842 = vmatprep.subr.mxu0 0.0
        %843 = vmatpush1.xpose.msra.mxu0 0.0
        %844 = vmatprep.subr.mxu0 0.0
        %845 = vmatpush1.xpose.msra.mxu0 0.0
        %846 = vmatprep.subr.mxu0 0.0
        %847 = vmatpush1.xpose.msra.mxu0 0.0
        %848 = vmatprep.subr.mxu0 0.0
        %849 = vmatpush1.xpose.msra.mxu0 0.0
        %850 = vmatprep.subr.mxu0 0.0
        %851 = vmatpush1.xpose.msra.mxu0 0.0
        %852 = vmatprep.subr.mxu0 0.0
        %853 = vmatpush1.xpose.msra.mxu0 0.0
        %854 = vmatprep.subr.mxu0 0.0
        %855 = vmatpush1.xpose.msra.mxu0 0.0
        %856 = vmatprep.subr.mxu0 0.0
        %857 = vmatpush1.xpose.msra.mxu0 0.0
        %858 = vmatprep.subr.mxu0 0.0
        %859 = vmatpush1.xpose.msra.mxu0 0.0
        %860 = vmatprep.subr.mxu0 0.0
        %861 = vmatpush1.xpose.msra.mxu0 0.0
        %862 = vmatprep.subr.mxu0 0.0
        %863 = vmatpush1.xpose.msra.mxu0 0.0
        %864 = vmatprep.subr.mxu0 0.0
        %865 = vmatpush1.xpose.msra.mxu0 0.0
        %866 = vmatprep.subr.mxu0 0.0
        %867 = vmatpush1.xpose.msra.mxu0 0.0
        %868 = vmatprep.mubr.f32.mxu0 0.0
        %869 = vmatmul.mubr.f32.gmra.mrb[0].mxu0 %v802
        %v870 = vpop.f32.mrb[0].mxu0
        %v871 = vadd.f32 0.0, %v870
        %v872 = vpop.f32.mrb[0].mxu0
        %873 = vdwg.mxu0
        %v874 = vmul.f32 %v871, 0.35355338
        %v875 = vadd.f32 %v874, %v609
        %v876 = vsel %vm591, %v875, -inf
        %877 = vmax.xlane.f32.xlu0 %v876
        %v878 = vpop.xlane.xlu0 %877
        %v879 = vsub.f32 %v875, %v878
        %v880 = vmul.f32 %v879, 1.442695
        %v881 = vpow.pop %v880
        %v882 = vsel %vm591, %v881, 0.0
        %883 = vadd.xlane.f32.xlu0 %v882
        %v884 = vpop.xlane.xlu0 %883
        %v885 = vrcp.pop %v884
        %v886 = vmul.f32 %v881, %v885
        %v888 = vsel %vm591, %v886, 0
        %890 = vmatprep.subr.mxu0 0.0
        %891 = vmatpush1.msra.mxu0 %v608
        %892 = vmatprep.subr.mxu0 0.0
        %893 = vmatpush1.msra.mxu0 0.0
        %894 = vmatprep.subr.mxu0 0.0
        %895 = vmatpush1.msra.mxu0 0.0
        %896 = vmatprep.subr.mxu0 0.0
        %897 = vmatpush1.msra.mxu0 0.0
        %898 = vmatprep.subr.mxu0 0.0
        %899 = vmatpush1.msra.mxu0 0.0
        %900 = vmatprep.subr.mxu0 0.0
        %901 = vmatpush1.msra.mxu0 0.0
        %902 = vmatprep.subr.mxu0 0.0
        %903 = vmatpush1.msra.mxu0 0.0
        %904 = vmatprep.subr.mxu0 0.0
        %905 = vmatpush1.msra.mxu0 0.0
        %906 = vmatprep.subr.mxu0 0.0
        %907 = vmatpush1.msra.mxu0 0.0
        %908 = vmatprep.subr.mxu0 0.0
        %909 = vmatpush1.msra.mxu0 0.0
        %910 = vmatprep.subr.mxu0 0.0
        %911 = vmatpush1.msra.mxu0 0.0
        %912 = vmatprep.subr.mxu0 0.0
        %913 = vmatpush1.msra.mxu0 0.0
        %914 = vmatprep.subr.mxu0 0.0
        %915 = vmatpush1.msra.mxu0 0.0
        %916 = vmatprep.subr.mxu0 0.0
        %917 = vmatpush1.msra.mxu0 0.0
        %918 = vmatprep.subr.mxu0 0.0
        %919 = vmatpush1.msra.mxu0 0.0
        %920 = vmatprep.subr.mxu0 0.0
        %921 = vmatpush1.msra.mxu0 0.0
        %922 = vmatprep.subr.mxu0 0.0
        %923 = vmatpush1.msra.mxu0 0.0
        %924 = vmatprep.subr.mxu0 0.0
        %925 = vmatpush1.msra.mxu0 0.0
        %926 = vmatprep.subr.mxu0 0.0
        %927 = vmatpush1.msra.mxu0 0.0
        %928 = vmatprep.subr.mxu0 0.0
        %929 = vmatpush1.msra.mxu0 0.0
        %930 = vmatprep.subr.mxu0 0.0
        %931 = vmatpush1.msra.mxu0 0.0
        %932 = vmatprep.subr.mxu0 0.0
        %933 = vmatpush1.msra.mxu0 0.0
        %934 = vmatprep.subr.mxu0 0.0
        %935 = vmatpush1.msra.mxu0 0.0
        %936 = vmatprep.subr.mxu0 0.0
        %937 = vmatpush1.msra.mxu0 0.0
        %938 = vmatprep.subr.mxu0 0.0
        %939 = vmatpush1.msra.mxu0 0.0
        %940 = vmatprep.subr.mxu0 0.0
        %941 = vmatpush1.msra.mxu0 0.0
        %942 = vmatprep.subr.mxu0 0.0
        %943 = vmatpush1.msra.mxu0 0.0
        %944 = vmatprep.subr.mxu0 0.0
        %945 = vmatpush1.msra.mxu0 0.0
        %946 = vmatprep.subr.mxu0 0.0
        %947 = vmatpush1.msra.mxu0 0.0
        %948 = vmatprep.subr.mxu0 0.0
        %949 = vmatpush1.msra.mxu0 0.0
        %950 = vmatprep.subr.mxu0 0.0
        %951 = vmatpush1.msra.mxu0 0.0
        %952 = vmatprep.subr.mxu0 0.0
        %953 = vmatpush1.msra.mxu0 0.0
        %954 = vmatprep.mubr.f32.mxu0 0.0
        %955 = vmatmul.mubr.f32.gmra.mrb[0].mxu0 %v888
        %v956 = vpop.f32.mrb[0].mxu0
        %v957 = vadd.f32 0.0, %v956
        %v958 = vpop.f32.mrb[0].mxu0
        %959 = vdwg.mxu0
        %960 = vrot.lane.b32.xlu0 %v544, 108
        %v961 = vpop.permute.xlu0 %960
        %963 = vrot.lane.b32.xlu0 %v539, 116
        %v964 = vpop.permute.xlu0 %963
        %v966 = vsel %vm553, %v961, %v964
        %967 = vrot.lane.b32.xlu0 %v542, 16
        %v968 = vpop.permute.xlu0 %967
        %v970 = vmul.f32 %v539, %v968
        %v971 = vmul.f32 %v966, %v543
        %973 = vrot.lane.b32.xlu0 %v971, 16
        %v974 = vpop.permute.xlu0 %973
        %v976 = vadd.f32 %v970, %v974
        %978 = vrot.lane.b32.xlu0 %v976, 112
        %v979 = vpop.permute.xlu0 %978
        %980 = vrot.lane.b32.xlu0 %v607, 120
        %v981 = vpop.permute.xlu0 %980
        %v982 = vsel %vm591, %v979, 0
        %v984 = vsel %vm591, %v981, 0
        %986 = vmatprep.subr.mxu0 0.0
        %987 = vmatpush1.xpose.msra.mxu0 %v984
        %988 = vmatprep.subr.mxu0 0.0
        %989 = vmatpush1.xpose.msra.mxu0 0.0
        %990 = vmatprep.subr.mxu0 0.0
        %991 = vmatpush1.xpose.msra.mxu0 0.0
        %992 = vmatprep.subr.mxu0 0.0
        %993 = vmatpush1.xpose.msra.mxu0 0.0
        %994 = vmatprep.subr.mxu0 0.0
        %995 = vmatpush1.xpose.msra.mxu0 0.0
        %996 = vmatprep.subr.mxu0 0.0
        %997 = vmatpush1.xpose.msra.mxu0 0.0
        %998 = vmatprep.subr.mxu0 0.0
        %999 = vmatpush1.xpose.msra.mxu0 0.0
        %1000 = vmatprep.subr.mxu0 0.0
        %1001 = vmatpush1.xpose.msra.mxu0 0.0
        %1002 = vmatprep.subr.mxu0 0.0
        %1003 = vmatpush1.xpose.msra.mxu0 0.0
        %1004 = vmatprep.subr.mxu0 0.0
        %1005 = vmatpush1.xpose.msra.mxu0 0.0
        %1006 = vmatprep.subr.mxu0 0.0
        %1007 = vmatpush1.xpose.msra.mxu0 0.0
        %1008 = vmatprep.subr.mxu0 0.0
        %1009 = vmatpush1.xpose.msra.mxu0 0.0
        %1010 = vmatprep.subr.mxu0 0.0
        %1011 = vmatpush1.xpose.msra.mxu0 0.0
        %1012 = vmatprep.subr.mxu0 0.0
        %1013 = vmatpush1.xpose.msra.mxu0 0.0
        %1014 = vmatprep.subr.mxu0 0.0
        %1015 = vmatpush1.xpose.msra.mxu0 0.0
        %1016 = vmatprep.subr.mxu0 0.0
        %1017 = vmatpush1.xpose.msra.mxu0 0.0
        %1018 = vmatprep.subr.mxu0 0.0
        %1019 = vmatpush1.xpose.msra.mxu0 0.0
        %1020 = vmatprep.subr.mxu0 0.0
        %1021 = vmatpush1.xpose.msra.mxu0 0.0
        %1022 = vmatprep.subr.mxu0 0.0
        %1023 = vmatpush1.xpose.msra.mxu0 0.0
        %1024 = vmatprep.subr.mxu0 0.0
        %1025 = vmatpush1.xpose.msra.mxu0 0.0
        %1026 = vmatprep.subr.mxu0 0.0
        %1027 = vmatpush1.xpose.msra.mxu0 0.0
        %1028 = vmatprep.subr.mxu0 0.0
        %1029 = vmatpush1.xpose.msra.mxu0 0.0
        %1030 = vmatprep.subr.mxu0 0.0
        %1031 = vmatpush1.xpose.msra.mxu0 0.0
        %1032 = vmatprep.subr.mxu0 0.0
        %1033 = vmatpush1.xpose.msra.mxu0 0.0
        %1034 = vmatprep.subr.mxu0 0.0
        %1035 = vmatpush1.xpose.msra.mxu0 0.0
        %1036 = vmatprep.subr.mxu0 0.0
        %1037 = vmatpush1.xpose.msra.mxu0 0.0
        %1038 = vmatprep.subr.mxu0 0.0
        %1039 = vmatpush1.xpose.msra.mxu0 0.0
        %1040 = vmatprep.subr.mxu0 0.0
        %1041 = vmatpush1.xpose.msra.mxu0 0.0
        %1042 = vmatprep.subr.mxu0 0.0
        %1043 = vmatpush1.xpose.msra.mxu0 0.0
        %1044 = vmatprep.subr.mxu0 0.0
        %1045 = vmatpush1.xpose.msra.mxu0 0.0
        %1046 = vmatprep.subr.mxu0 0.0
        %1047 = vmatpush1.xpose.msra.mxu0 0.0
        %1048 = vmatprep.subr.mxu0 0.0
        %1049 = vmatpush1.xpose.msra.mxu0 0.0
        %1050 = vmatprep.mubr.f32.mxu0 0.0
        %1051 = vmatmul.mubr.f32.gmra.mrb[0].mxu0 %v982
        %v1052 = vpop.f32.mrb[0].mxu0
        %v1053 = vadd.f32 0.0, %v1052
        %v1054 = vpop.f32.mrb[0].mxu0
        %1055 = vdwg.mxu0
        %v1056 = vmul.f32 %v1053, 0.35355338
        %v1057 = vadd.f32 %v1056, %v609
        %v1058 = vsel %vm591, %v1057, -inf
        %1059 = vmax.xlane.f32.xlu0 %v1058
        %v1060 = vpop.xlane.xlu0 %1059
        %v1061 = vsub.f32 %v1057, %v1060
        %v1062 = vmul.f32 %v1061, 1.442695
        %v1063 = vpow.pop %v1062
        %v1064 = vsel %vm591, %v1063, 0.0
        %1065 = vadd.xlane.f32.xlu0 %v1064
        %v1066 = vpop.xlane.xlu0 %1065
        %v1067 = vrcp.pop %v1066
        %v1068 = vmul.f32 %v1063, %v1067
        %1070 = vrot.lane.b32.xlu0 %v608, 120
        %v1071 = vpop.permute.xlu0 %1070
        %v1074 = vsel %vm591, %v1068, 0
        %1076 = vmatprep.subr.mxu0 0.0
        %1077 = vmatpush1.msra.mxu0 %v1071
        %1078 = vmatprep.subr.mxu0 0.0
        %1079 = vmatpush1.msra.mxu0 0.0
        %1080 = vmatprep.subr.mxu0 0.0
        %1081 = vmatpush1.msra.mxu0 0.0
        %1082 = vmatprep.subr.mxu0 0.0
        %1083 = vmatpush1.msra.mxu0 0.0
        %1084 = vmatprep.subr.mxu0 0.0
        %1085 = vmatpush1.msra.mxu0 0.0
        %1086 = vmatprep.subr.mxu0 0.0
        %1087 = vmatpush1.msra.mxu0 0.0
        %1088 = vmatprep.subr.mxu0 0.0
        %1089 = vmatpush1.msra.mxu0 0.0
        %1090 = vmatprep.subr.mxu0 0.0
        %1091 = vmatpush1.msra.mxu0 0.0
        %1092 = vmatprep.subr.mxu0 0.0
        %1093 = vmatpush1.msra.mxu0 0.0
        %1094 = vmatprep.subr.mxu0 0.0
        %1095 = vmatpush1.msra.mxu0 0.0
        %1096 = vmatprep.subr.mxu0 0.0
        %1097 = vmatpush1.msra.mxu0 0.0
        %1098 = vmatprep.subr.mxu0 0.0
        %1099 = vmatpush1.msra.mxu0 0.0
        %1100 = vmatprep.subr.mxu0 0.0
        %1101 = vmatpush1.msra.mxu0 0.0
        %1102 = vmatprep.subr.mxu0 0.0
        %1103 = vmatpush1.msra.mxu0 0.0
        %1104 = vmatprep.subr.mxu0 0.0
        %1105 = vmatpush1.msra.mxu0 0.0
        %1106 = vmatprep.subr.mxu0 0.0
        %1107 = vmatpush1.msra.mxu0 0.0
        %1108 = vmatprep.subr.mxu0 0.0
        %1109 = vmatpush1.msra.mxu0 0.0
        %1110 = vmatprep.subr.mxu0 0.0
        %1111 = vmatpush1.msra.mxu0 0.0
        %1112 = vmatprep.subr.mxu0 0.0
        %1113 = vmatpush1.msra.mxu0 0.0
        %1114 = vmatprep.subr.mxu0 0.0
        %1115 = vmatpush1.msra.mxu0 0.0
        %1116 = vmatprep.subr.mxu0 0.0
        %1117 = vmatpush1.msra.mxu0 0.0
        %1118 = vmatprep.subr.mxu0 0.0
        %1119 = vmatpush1.msra.mxu0 0.0
        %1120 = vmatprep.subr.mxu0 0.0
        %1121 = vmatpush1.msra.mxu0 0.0
        %1122 = vmatprep.subr.mxu0 0.0
        %1123 = vmatpush1.msra.mxu0 0.0
        %1124 = vmatprep.subr.mxu0 0.0
        %1125 = vmatpush1.msra.mxu0 0.0
        %1126 = vmatprep.subr.mxu0 0.0
        %1127 = vmatpush1.msra.mxu0 0.0
        %1128 = vmatprep.subr.mxu0 0.0
        %1129 = vmatpush1.msra.mxu0 0.0
        %1130 = vmatprep.subr.mxu0 0.0
        %1131 = vmatpush1.msra.mxu0 0.0
        %1132 = vmatprep.subr.mxu0 0.0
        %1133 = vmatpush1.msra.mxu0 0.0
        %1134 = vmatprep.subr.mxu0 0.0
        %1135 = vmatpush1.msra.mxu0 0.0
        %1136 = vmatprep.subr.mxu0 0.0
        %1137 = vmatpush1.msra.mxu0 0.0
        %1138 = vmatprep.subr.mxu0 0.0
        %1139 = vmatpush1.msra.mxu0 0.0
        %1140 = vmatprep.mubr.f32.mxu0 0.0
        %1141 = vmatmul.mubr.f32.gmra.mrb[0].mxu0 %v1074
        %v1142 = vpop.f32.mrb[0].mxu0
        %v1143 = vadd.f32 0.0, %v1142
        %v1144 = vpop.f32.mrb[0].mxu0
        %1145 = vdwg.mxu0
        %1146 = vrot.lane.b32.xlu0 %v544, 100
        %v1147 = vpop.permute.xlu0 %1146
        %1149 = vrot.lane.b32.xlu0 %v539, 108
        %v1150 = vpop.permute.xlu0 %1149
        %v1152 = vsel %vm553, %v1147, %v1150
        %1153 = vrot.lane.b32.xlu0 %v542, 24
        %v1154 = vpop.permute.xlu0 %1153
        %v1156 = vmul.f32 %v539, %v1154
        %v1157 = vmul.f32 %v1152, %v543
        %1159 = vrot.lane.b32.xlu0 %v1157, 24
        %v1160 = vpop.permute.xlu0 %1159
        %v1162 = vadd.f32 %v1156, %v1160
        %1164 = vrot.lane.b32.xlu0 %v1162, 104
        %v1165 = vpop.permute.xlu0 %1164
        %v1166 = vsel %vm591, %v1165, 0
        %1168 = vmatprep.subr.mxu0 0.0
        %1169 = vmatpush1.xpose.msra.mxu0 %v984
        %1170 = vmatprep.subr.mxu0 0.0
        %1171 = vmatpush1.xpose.msra.mxu0 0.0
        %1172 = vmatprep.subr.mxu0 0.0
        %1173 = vmatpush1.xpose.msra.mxu0 0.0
        %1174 = vmatprep.subr.mxu0 0.0
        %1175 = vmatpush1.xpose.msra.mxu0 0.0
        %1176 = vmatprep.subr.mxu0 0.0
        %1177 = vmatpush1.xpose.msra.mxu0 0.0
        %1178 = vmatprep.subr.mxu0 0.0
        %1179 = vmatpush1.xpose.msra.mxu0 0.0
        %1180 = vmatprep.subr.mxu0 0.0
        %1181 = vmatpush1.xpose.msra.mxu0 0.0
        %1182 = vmatprep.subr.mxu0 0.0
        %1183 = vmatpush1.xpose.msra.mxu0 0.0
        %1184 = vmatprep.subr.mxu0 0.0
        %1185 = vmatpush1.xpose.msra.mxu0 0.0
        %1186 = vmatprep.subr.mxu0 0.0
        %1187 = vmatpush1.xpose.msra.mxu0 0.0
        %1188 = vmatprep.subr.mxu0 0.0
        %1189 = vmatpush1.xpose.msra.mxu0 0.0
        %1190 = vmatprep.subr.mxu0 0.0
        %1191 = vmatpush1.xpose.msra.mxu0 0.0
        %1192 = vmatprep.subr.mxu0 0.0
        %1193 = vmatpush1.xpose.msra.mxu0 0.0
        %1194 = vmatprep.subr.mxu0 0.0
        %1195 = vmatpush1.xpose.msra.mxu0 0.0
        %1196 = vmatprep.subr.mxu0 0.0
        %1197 = vmatpush1.xpose.msra.mxu0 0.0
        %1198 = vmatprep.subr.mxu0 0.0
        %1199 = vmatpush1.xpose.msra.mxu0 0.0
        %1200 = vmatprep.subr.mxu0 0.0
        %1201 = vmatpush1.xpose.msra.mxu0 0.0
        %1202 = vmatprep.subr.mxu0 0.0
        %1203 = vmatpush1.xpose.msra.mxu0 0.0
        %1204 = vmatprep.subr.mxu0 0.0
        %1205 = vmatpush1.xpose.msra.mxu0 0.0
        %1206 = vmatprep.subr.mxu0 0.0
        %1207 = vmatpush1.xpose.msra.mxu0 0.0
        %1208 = vmatprep.subr.mxu0 0.0
        %1209 = vmatpush1.xpose.msra.mxu0 0.0
        %1210 = vmatprep.subr.mxu0 0.0
        %1211 = vmatpush1.xpose.msra.mxu0 0.0
        %1212 = vmatprep.subr.mxu0 0.0
        %1213 = vmatpush1.xpose.msra.mxu0 0.0
        %1214 = vmatprep.subr.mxu0 0.0
        %1215 = vmatpush1.xpose.msra.mxu0 0.0
        %1216 = vmatprep.subr.mxu0 0.0
        %1217 = vmatpush1.xpose.msra.mxu0 0.0
        %1218 = vmatprep.subr.mxu0 0.0
        %1219 = vmatpush1.xpose.msra.mxu0 0.0
        %1220 = vmatprep.subr.mxu0 0.0
        %1221 = vmatpush1.xpose.msra.mxu0 0.0
        %1222 = vmatprep.subr.mxu0 0.0
        %1223 = vmatpush1.xpose.msra.mxu0 0.0
        %1224 = vmatprep.subr.mxu0 0.0
        %1225 = vmatpush1.xpose.msra.mxu0 0.0
        %1226 = vmatprep.subr.mxu0 0.0
        %1227 = vmatpush1.xpose.msra.mxu0 0.0
        %1228 = vmatprep.subr.mxu0 0.0
        %1229 = vmatpush1.xpose.msra.mxu0 0.0
        %1230 = vmatprep.subr.mxu0 0.0
        %1231 = vmatpush1.xpose.msra.mxu0 0.0
        %1232 = vmatprep.mubr.f32.mxu0 0.0
        %1233 = vmatmul.mubr.f32.gmra.mrb[0].mxu0 %v1166
        %v1234 = vpop.f32.mrb[0].mxu0
        %v1235 = vadd.f32 0.0, %v1234
        %v1236 = vpop.f32.mrb[0].mxu0
        %1237 = vdwg.mxu0
        %v1238 = vmul.f32 %v1235, 0.35355338
        %v1239 = vadd.f32 %v1238, %v609
        %v1240 = vsel %vm591, %v1239, -inf
        %1241 = vmax.xlane.f32.xlu0 %v1240
        %v1242 = vpop.xlane.xlu0 %1241
        %v1243 = vsub.f32 %v1239, %v1242
        %v1244 = vmul.f32 %v1243, 1.442695
        %v1245 = vpow.pop %v1244
        %v1246 = vsel %vm591, %v1245, 0.0
        %1247 = vadd.xlane.f32.xlu0 %v1246
        %v1248 = vpop.xlane.xlu0 %1247
        %v1249 = vrcp.pop %v1248
        %v1250 = vmul.f32 %v1245, %v1249
        %v1252 = vsel %vm591, %v1250, 0
        %1254 = vmatprep.subr.mxu0 0.0
        %1255 = vmatpush1.msra.mxu0 %v1071
        %1256 = vmatprep.subr.mxu0 0.0
        %1257 = vmatpush1.msra.mxu0 0.0
        %1258 = vmatprep.subr.mxu0 0.0
        %1259 = vmatpush1.msra.mxu0 0.0
        %1260 = vmatprep.subr.mxu0 0.0
        %1261 = vmatpush1.msra.mxu0 0.0
        %1262 = vmatprep.subr.mxu0 0.0
        %1263 = vmatpush1.msra.mxu0 0.0
        %1264 = vmatprep.subr.mxu0 0.0
        %1265 = vmatpush1.msra.mxu0 0.0
        %1266 = vmatprep.subr.mxu0 0.0
        %1267 = vmatpush1.msra.mxu0 0.0
        %1268 = vmatprep.subr.mxu0 0.0
        %1269 = vmatpush1.msra.mxu0 0.0
        %1270 = vmatprep.subr.mxu0 0.0
        %1271 = vmatpush1.msra.mxu0 0.0
        %1272 = vmatprep.subr.mxu0 0.0
        %1273 = vmatpush1.msra.mxu0 0.0
        %1274 = vmatprep.subr.mxu0 0.0
        %1275 = vmatpush1.msra.mxu0 0.0
        %1276 = vmatprep.subr.mxu0 0.0
        %1277 = vmatpush1.msra.mxu0 0.0
        %1278 = vmatprep.subr.mxu0 0.0
        %1279 = vmatpush1.msra.mxu0 0.0
        %1280 = vmatprep.subr.mxu0 0.0
        %1281 = vmatpush1.msra.mxu0 0.0
        %1282 = vmatprep.subr.mxu0 0.0
        %1283 = vmatpush1.msra.mxu0 0.0
        %1284 = vmatprep.subr.mxu0 0.0
        %1285 = vmatpush1.msra.mxu0 0.0
        %1286 = vmatprep.subr.mxu0 0.0
        %1287 = vmatpush1.msra.mxu0 0.0
        %1288 = vmatprep.subr.mxu0 0.0
        %1289 = vmatpush1.msra.mxu0 0.0
        %1290 = vmatprep.subr.mxu0 0.0
        %1291 = vmatpush1.msra.mxu0 0.0
        %1292 = vmatprep.subr.mxu0 0.0
        %1293 = vmatpush1.msra.mxu0 0.0
        %1294 = vmatprep.subr.mxu0 0.0
        %1295 = vmatpush1.msra.mxu0 0.0
        %1296 = vmatprep.subr.mxu0 0.0
        %1297 = vmatpush1.msra.mxu0 0.0
        %1298 = vmatprep.subr.mxu0 0.0
        %1299 = vmatpush1.msra.mxu0 0.0
        %1300 = vmatprep.subr.mxu0 0.0
        %1301 = vmatpush1.msra.mxu0 0.0
        %1302 = vmatprep.subr.mxu0 0.0
        %1303 = vmatpush1.msra.mxu0 0.0
        %1304 = vmatprep.subr.mxu0 0.0
        %1305 = vmatpush1.msra.mxu0 0.0
        %1306 = vmatprep.subr.mxu0 0.0
        %1307 = vmatpush1.msra.mxu0 0.0
        %1308 = vmatprep.subr.mxu0 0.0
        %1309 = vmatpush1.msra.mxu0 0.0
        %1310 = vmatprep.subr.mxu0 0.0
        %1311 = vmatpush1.msra.mxu0 0.0
        %1312 = vmatprep.subr.mxu0 0.0
        %1313 = vmatpush1.msra.mxu0 0.0
        %1314 = vmatprep.subr.mxu0 0.0
        %1315 = vmatpush1.msra.mxu0 0.0
        %1316 = vmatprep.subr.mxu0 0.0
        %1317 = vmatpush1.msra.mxu0 0.0
        %1318 = vmatprep.mubr.f32.mxu0 0.0
        %1319 = vmatmul.mubr.f32.gmra.mrb[0].mxu0 %v1252
        %v1320 = vpop.f32.mrb[0].mxu0
        %v1321 = vadd.f32 0.0, %v1320
        %v1322 = vpop.f32.mrb[0].mxu0
        %1323 = vdwg.mxu0
        %1325 = vrot.lane.b32.xlu0 %v957, 8
        %v1326 = vpop.permute.xlu0 %1325
        %1329 = vrot.lane.b32.xlu0 %v1143, 16
        %v1330 = vpop.permute.xlu0 %1329
        %1333 = vrot.lane.b32.xlu0 %v1321, 24
        %v1334 = vpop.permute.xlu0 %1333
        %v1336 = vsel %vm591, %v779, %v1326
        %v1337 = vsel %vm595, %v1336, %v1330
        %vm1338 = vcmask 195584
        %v1339 = vsel %vm1338, %v1337, %v1334
        %v1340 = vld [vmem:[%s2] sm:$0xff]
        %v1341 = vld [vmem:[%s2 + $0x8] sm:$0xff]
        %v1342 = vld [vmem:[%s2 + $0x10] sm:$0xff]
        %v1343 = vld [vmem:[%s2 + $0x18] sm:$0xff]
        %v1345 = vsel %vm468, %v1339, 0
        %1347 = vmatprep.subr.mxu0 0.0
        %1348 = vmatpush1.msra.mxu0 %v1340
        %1349 = vmatprep.subr.mxu0 0.0
        %1350 = vmatpush1.msra.mxu0 %v1341
        %1351 = vmatprep.subr.mxu0 0.0
        %1352 = vmatpush1.msra.mxu0 %v1342
        %1353 = vmatprep.subr.mxu0 0.0
        %1354 = vmatpush1.msra.mxu0 %v1343
        %1355 = vmatprep.subr.mxu0 0.0
        %1356 = vmatpush1.msra.mxu0 0.0
        %1357 = vmatprep.subr.mxu0 0.0
        %1358 = vmatpush1.msra.mxu0 0.0
        %1359 = vmatprep.subr.mxu0 0.0
        %1360 = vmatpush1.msra.mxu0 0.0
        %1361 = vmatprep.subr.mxu0 0.0
        %1362 = vmatpush1.msra.mxu0 0.0
        %1363 = vmatprep.subr.mxu0 0.0
        %1364 = vmatpush1.msra.mxu0 0.0
        %1365 = vmatprep.subr.mxu0 0.0
        %1366 = vmatpush1.msra.mxu0 0.0
        %1367 = vmatprep.subr.mxu0 0.0
        %1368 = vmatpush1.msra.mxu0 0.0
        %1369 = vmatprep.subr.mxu0 0.0
        %1370 = vmatpush1.msra.mxu0 0.0
        %1371 = vmatprep.subr.mxu0 0.0
        %1372 = vmatpush1.msra.mxu0 0.0
        %1373 = vmatprep.subr.mxu0 0.0
        %1374 = vmatpush1.msra.mxu0 0.0
        %1375 = vmatprep.subr.mxu0 0.0
        %1376 = vmatpush1.msra.mxu0 0.0
        %1377 = vmatprep.subr.mxu0 0.0
        %1378 = vmatpush1.msra.mxu0 0.0
        %1379 = vmatprep.subr.mxu0 0.0
        %1380 = vmatpush1.msra.mxu0 0.0
        %1381 = vmatprep.subr.mxu0 0.0
        %1382 = vmatpush1.msra.mxu0 0.0
        %1383 = vmatprep.subr.mxu0 0.0
        %1384 = vmatpush1.msra.mxu0 0.0
        %1385 = vmatprep.subr.mxu0 0.0
        %1386 = vmatpush1.msra.mxu0 0.0
        %1387 = vmatprep.subr.mxu0 0.0
        %1388 = vmatpush1.msra.mxu0 0.0
        %1389 = vmatprep.subr.mxu0 0.0
        %1390 = vmatpush1.msra.mxu0 0.0
        %1391 = vmatprep.subr.mxu0 0.0
        %1392 = vmatpush1.msra.mxu0 0.0
        %1393 = vmatprep.subr.mxu0 0.0
        %1394 = vmatpush1.msra.mxu0 0.0
        %1395 = vmatprep.subr.mxu0 0.0
        %1396 = vmatpush1.msra.mxu0 0.0
        %1397 = vmatprep.subr.mxu0 0.0
        %1398 = vmatpush1.msra.mxu0 0.0
        %1399 = vmatprep.subr.mxu0 0.0
        %1400 = vmatpush1.msra.mxu0 0.0
        %1401 = vmatprep.subr.mxu0 0.0
        %1402 = vmatpush1.msra.mxu0 0.0
        %1403 = vmatprep.subr.mxu0 0.0
        %1404 = vmatpush1.msra.mxu0 0.0
        %1405 = vmatprep.subr.mxu0 0.0
        %1406 = vmatpush1.msra.mxu0 0.0
        %1407 = vmatprep.subr.mxu0 0.0
        %1408 = vmatpush1.msra.mxu0 0.0
        %1409 = vmatprep.subr.mxu0 0.0
        %1410 = vmatpush1.msra.mxu0 0.0
        %1411 = vmatprep.mubr.f32.mxu0 0.0
        %1412 = vmatmul.mubr.f32.gmra.mrb[0].mxu0 %v1345
        %v1413 = vpop.f32.mrb[0].mxu0
        %v1414 = vadd.f32 0.0, %v1413
        %v1415 = vpop.f32.mrb[0].mxu0
        %1416 = vdwg.mxu0
        %1417 = vst.msk [vmem:[%s444] sm:$0xff] %vm468, %v1414
        %s1418 = sand.u32 %s223, 1
        %s1419 = scalar_lea.sflag [#allocation4], %s1418
        %s1420 = sand.u32 %s223, 1
        %s1421 = smul.addr %s1420, 8
        %s1422 = scalar_lea.vmem [#allocation8], %s1421
        %s1423 = sand.u32 %s32, 1
        %s1424 = scalar_lea.sflag [#allocation10], %s1423
        %s1425 = sand.u32 %s249, 1
        %s1426 = smul.addr %s1425, 16
        %s1427 = scalar_lea.vmem [#allocation9], %s1426
        %s1428 = sand.u32 %s32, 1
        %s1429 = scalar_lea.sflag [#allocation10], %s1428
        %s1430 = sand.u32 %s275, 1
        %s1431 = smul.addr %s1430, 16
        %s1432 = scalar_lea.vmem [#allocation11], %s1431
        // Predicated region
        $region65: #{tpu_custom_call.1} parent=51 // pred_check
          %p1433 = pneg %p233
        $region66: #{tpu_custom_call.1} parent=51 // pred_check_branch
          %1435 = sbr.rel (%p1433) target = $region68
        $region67: #{tpu_custom_call.1} parent=51 // pred_region
          %s1437 = ssub.s32 128, 128
          %1438 = vsyncadd %s1419, %s1437
          %s1439 = smul.addr %s32, 128
          %s1440 = scalar_lea.hbm %s8, %s1439
          %s1442 = sshll.u32 %s1422, 4
          %s1443 = int_to_ptr.vmem [resolvable:$true] %s1442
          %1445 = dma.vmem_to_hbm [thread:$0]  %s1443, 128, %s1440, %s1419
        $region68: #{tpu_custom_call.1} parent=51 // pred_fallthru
          _
        // Predicated region
        $region69: #{tpu_custom_call.1} parent=51 // pred_check
          %p1446 = pneg %p259
        $region70: #{tpu_custom_call.1} parent=51 // pred_check_branch
          %1448 = sbr.rel (%p1446) target = $region72
        $region71: #{tpu_custom_call.1} parent=51 // pred_region
          %s1450 = ssub.s32 256, 256
          %1451 = vsyncadd %s1424, %s1450
          %s1452 = smul.addr %s32, 2
          %s1453 = smul.addr %s1452, 128
          %s1454 = scalar_lea.hbm %s9, %s1453
          %s1455 = sshll.u32 %s1427, 4
          %s1456 = int_to_ptr.vmem [resolvable:$true] %s1455
          %1461 = dma.vmem_to_hbm [thread:$0]  %s1456, 256, %s1454, %s1424, 128, 128, 8
        $region72: #{tpu_custom_call.1} parent=51 // pred_fallthru
          _
        // Predicated region
        $region73: #{tpu_custom_call.1} parent=51 // pred_check
          %p1462 = pneg %p285
        $region74: #{tpu_custom_call.1} parent=51 // pred_check_branch
          %1464 = sbr.rel (%p1462) target = $region76
        $region75: #{tpu_custom_call.1} parent=51 // pred_region
          %s1466 = ssub.s32 256, 256
          %1467 = vsyncadd %s1429, %s1466
          %s1468 = smul.addr %s32, 2
          %s1469 = smul.addr %s1468, 128
          %s1470 = scalar_lea.hbm %s10, %s1469
          %s1471 = sshll.u32 %s1432, 4
          %s1472 = int_to_ptr.vmem [resolvable:$true] %s1471
          %1477 = dma.vmem_to_hbm [thread:$0]  %s1472, 256, %s1470, %s1429, 128, 128, 8
        $region76: #{tpu_custom_call.1} parent=51 // pred_fallthru
          _
      $region52: #{tpu_custom_call.1} parent=5 // pred_fallthru
        _
      %p1478 = scmp.le.s32.totalorder 2, %s27
      // Predicated region
      $region77: #{tpu_custom_call.1} parent=5 // pred_check
        %p1479 = pneg %p1478
      $region78: #{tpu_custom_call.1} parent=5 // pred_check_branch
        %1481 = sbr.rel (%p1479) target = $region80
      $region79: #{tpu_custom_call.1} parent=5 // pred_region
        %s1482 = ssub.s32 %s27, 2
        // Predicated region
        $region81: #{tpu_custom_call.1} parent=79 // pred_check
          %p1483 = pneg %p239
        $region82: #{tpu_custom_call.1} parent=79 // pred_check_branch
          %1485 = sbr.rel (%p1483) target = $region84
        $region83: #{tpu_custom_call.1} parent=79 // pred_region
          %s1486 = sand.u32 %s224, 1
          %s1487 = scalar_lea.sflag [#allocation4], %s1486
          %s1488 = sand.u32 %s224, 1
          %s1489 = smul.addr %s1488, 8
          %s1490 = scalar_lea.vmem [#allocation8], %s1489
          %1491 = dma.done %s1487, 128
        $region84: #{tpu_custom_call.1} parent=79 // pred_fallthru
          _
        // Predicated region
        $region85: #{tpu_custom_call.1} parent=79 // pred_check
          %p1492 = pneg %p265
        $region86: #{tpu_custom_call.1} parent=79 // pred_check_branch
          %1494 = sbr.rel (%p1492) target = $region88
        $region87: #{tpu_custom_call.1} parent=79 // pred_region
          %s1495 = sand.u32 %s33, 1
          %s1496 = scalar_lea.sflag [#allocation10], %s1495
          %s1497 = sand.u32 %s250, 1
          %s1498 = smul.addr %s1497, 16
          %s1499 = scalar_lea.vmem [#allocation9], %s1498
          %1500 = dma.done %s1496, 256
        $region88: #{tpu_custom_call.1} parent=79 // pred_fallthru
          _
        // Predicated region
        $region89: #{tpu_custom_call.1} parent=79 // pred_check
          %p1501 = pneg %p291
        $region90: #{tpu_custom_call.1} parent=79 // pred_check_branch
          %1503 = sbr.rel (%p1501) target = $region92
        $region91: #{tpu_custom_call.1} parent=79 // pred_region
          %s1504 = sand.u32 %s33, 1
          %s1505 = scalar_lea.sflag [#allocation10], %s1504
          %s1506 = sand.u32 %s276, 1
          %s1507 = smul.addr %s1506, 16
          %s1508 = scalar_lea.vmem [#allocation11], %s1507
          %1509 = dma.done %s1505, 256
        $region92: #{tpu_custom_call.1} parent=79 // pred_fallthru
          _
      $region80: #{tpu_custom_call.1} parent=5 // pred_fallthru
        _
    $region6: #{tpu_custom_call.1} parent=1 // loop_footer
      %s31 = sadd.s32 1, %s27
    $region7: #{tpu_custom_call.1} parent=1 // loop_footer_branch
      %26 = sbr.rel target = $region3
    $region8: #{tpu_custom_call.1} parent=1 // loop_exit
      _
    %1510 = vsyncpa [#allocation3], 1
    %s1511 = scalar_lea.sflag [#allocation3], 1
    %1512 = vsyncpa %s1511, 1
    %1513 = vsyncpa [#allocation6], 1
    %s1514 = scalar_lea.sflag [#allocation6], 1
    %1515 = vsyncpa %s1514, 1
    %1516 = vsyncpa [#allocation4], 1
    %s1517 = scalar_lea.sflag [#allocation4], 1
    %1518 = vsyncpa %s1517, 1
    %1519 = vsyncpa [#allocation10], 1
    %s1520 = scalar_lea.sflag [#allocation10], 1
    %1521 = vsyncpa %s1520, 1

</llo_original>
